<compile_context>
chip_gen: v6e
topology: v6e:2x2x1
jax: 0.10.0
libtpu: 0.0.40
codegen_flags: <defaults>
</compile_context>

<pallas_src>
import jax
import jax.numpy as jnp
from jax.experimental import pallas as pl
from jax.experimental.pallas import tpu as pltpu

# Problem sizes (AntBulletEnv-v0: state_dim=28, action_dim=8)
STATE_DIM = 28
ACTION_DIM = 8
IN_DIM = STATE_DIM + ACTION_DIM   # 36
H1 = 400                          # logical hidden sizes (PyTorch module)
H2 = 300
H1_PAD = 512                      # lane-multiple padded hidden sizes
H2_PAD = 384
MAX_ACTION = 1.0
PHI = 0.05

# Flattened BCQ evaluation batch (e.g. 32 states x 8 candidate actions).
BATCH = 256
MAX_TILE_B = 1024                 # single-tile cap; grid>1 only beyond this


def actor_kernel(x_ref, w1_ref, b1_ref, w2_ref, b2_ref, w3_ref, b3_ref,
                 out_ref):
    # x = concat([action, state], 1): residual action lives in lanes 0..7.
    x = x_ref[...]                                   # (tile_b, 36) f32
    a = x[:, :ACTION_DIM]                            # leading-lane slice

    # Layer 1: relu( x @ W1 + b1 )  -- bf16 MXU inputs, f32 accumulate.
    h = jnp.dot(x.astype(jnp.bfloat16), w1_ref[...],
                preferred_element_type=jnp.float32) + b1_ref[...]
    h = jnp.maximum(h, 0.0).astype(jnp.bfloat16)     # bf16 intermediate

    # Layer 2: relu( h @ W2 + b2 )
    h = jnp.dot(h, w2_ref[...],
                preferred_element_type=jnp.float32) + b2_ref[...]
    h = jnp.maximum(h, 0.0).astype(jnp.bfloat16)

    # Layer 3: phi * max_action * tanh( h @ W3 + b3 )
    h = jnp.dot(h, w3_ref[...],
                preferred_element_type=jnp.float32) + b3_ref[...]
    perturb = PHI * MAX_ACTION * jnp.tanh(h)

    # residual add + clamp (VPU/EUP, f32).
    out_ref[...] = jnp.clip(perturb + a, -MAX_ACTION, MAX_ACTION)


@jax.jit
def actor_forward(state, action, params):
    """Fused Actor forward.  state: (B, 28) f32, action: (B, 8) f32."""
    w1, b1, w2, b2, w3, b3 = params
    B = state.shape[0]

    # [action, state] ordering (W1 rows are reordered to match in init_params)
    x = jnp.concatenate([action.astype(jnp.float32),
                         state.astype(jnp.float32)], axis=1)       # (B, 36)

    # Single batch tile (grid=(1,)) for B <= 1024; 1024-row tiles beyond.
    if B <= MAX_TILE_B:
        tile_b = max(8, ((B + 7) // 8) * 8)
    else:
        tile_b = MAX_TILE_B
    b_pad = ((B + tile_b - 1) // tile_b) * tile_b
    if b_pad != B:
        x = jnp.pad(x, ((0, b_pad - B), (0, 0)))

    grid = (b_pad // tile_b,)
    # Only shard tiles across v7x's two TensorCores when there is enough
    # per-TC work to amortize duplicating the ~440 KB weight DMA.
    semantics = ("parallel",) if grid[0] > 1 else ("arbitrary",)

    weight_bytes = (w1.size * 2 + b1.size * 4 + w2.size * 2 + b2.size * 4 +
                    w3.size * 2 + b3.size * 4)
    cost = pl.CostEstimate(
        flops=2 * b_pad * (IN_DIM * H1_PAD + H1_PAD * H2_PAD
                           + H2_PAD * ACTION_DIM),
        transcendentals=b_pad * ACTION_DIM,
        bytes_accessed=weight_bytes + b_pad * IN_DIM * 4
                       + b_pad * ACTION_DIM * 4)

    out = pl.pallas_call(
        actor_kernel,
        out_shape=jax.ShapeDtypeStruct((b_pad, ACTION_DIM), jnp.float32),
        grid=grid,
        in_specs=[
            pl.BlockSpec((tile_b, IN_DIM), lambda i: (i, 0)),   # cat(a, s)
            pl.BlockSpec(w1.shape, lambda i: (0, 0)),           # W1 (36, 512) bf16
            pl.BlockSpec(b1.shape, lambda i: (0, 0)),           # b1 (1, 512) f32
            pl.BlockSpec(w2.shape, lambda i: (0, 0)),           # W2 (512, 384) bf16
            pl.BlockSpec(b2.shape, lambda i: (0, 0)),           # b2 (1, 384) f32
            pl.BlockSpec(w3.shape, lambda i: (0, 0)),           # W3 (384, 8) bf16
            pl.BlockSpec(b3.shape, lambda i: (0, 0)),           # b3 (1, 8) f32
        ],
        out_specs=pl.BlockSpec((tile_b, ACTION_DIM), lambda i: (i, 0)),
        compiler_params=pltpu.CompilerParams(
            dimension_semantics=semantics),
        cost_estimate=cost,
    )(x, w1, b1, w2, b2, w3, b3)
    return out[:B]


def init_params(key):
    """PyTorch nn.Linear-style init (U(-1/sqrt(in), 1/sqrt(in))).

    Returns the logical f32 weights (for the pure-f32 reference) and the
    kernel params: W1 rows reordered for the [action, state] concat, hidden
    dims zero-padded to lane multiples, weights cast to bf16.
    """
    def linear(key, fan_in, fan_out):
        kw, kb = jax.random.split(key)
        bound = 1.0 / jnp.sqrt(fan_in)
        w = jax.random.uniform(kw, (fan_in, fan_out), jnp.float32, -bound, bound)
        b = jax.random.uniform(kb, (1, fan_out), jnp.float32, -bound, bound)
        return w, b

    k1, k2, k3 = jax.random.split(key, 3)
    w1, b1 = linear(k1, STATE_DIM + ACTION_DIM, H1)   # (36, 400), (1, 400)
    w2, b2 = linear(k2, H1, H2)                       # (400, 300), (1, 300)
    w3, b3 = linear(k3, H2, ACTION_DIM)               # (300, 8),  (1, 8)
    logical = (w1, b1, w2, b2, w3, b3)

    # Reorder W1 rows so x = [action, state] matches the PyTorch
    # cat([state, action]) math exactly, then zero-pad hidden dims.
    w1r = jnp.concatenate([w1[STATE_DIM:], w1[:STATE_DIM]], axis=0)  # (36, 400)
    w1p = jnp.pad(w1r, ((0, 0), (0, H1_PAD - H1))).astype(jnp.bfloat16)
    b1p = jnp.pad(b1, ((0, 0), (0, H1_PAD - H1)))
    w2p = jnp.pad(w2, ((0, H1_PAD - H1), (0, H2_PAD - H2))).astype(jnp.bfloat16)
    b2p = jnp.pad(b2, ((0, 0), (0, H2_PAD - H2)))
    w3p = jnp.pad(w3, ((0, H2_PAD - H2), (0, 0))).astype(jnp.bfloat16)
    b3p = b3
    kernel_params = (w1p, b1p, w2p, b2p, w3p, b3p)
    return logical, kernel_params


def actor_reference_bf16(state, action, kernel_params):
    """JAX reference using the same bf16-weight/activation, f32-acc math."""
    w1, b1, w2, b2, w3, b3 = kernel_params
    x = jnp.concatenate([action, state], axis=1)
    h = jnp.maximum(jnp.dot(x.astype(jnp.bfloat16), w1,
                            preferred_element_type=jnp.float32) + b1, 0.0)
    h = h.astype(jnp.bfloat16)
    h = jnp.maximum(jnp.dot(h, w2,
                            preferred_element_type=jnp.float32) + b2, 0.0)
    h = h.astype(jnp.bfloat16)
    p = PHI * MAX_ACTION * jnp.tanh(
        jnp.dot(h, w3, preferred_element_type=jnp.float32) + b3)
    return jnp.clip(p + action, -MAX_ACTION, MAX_ACTION)


def actor_reference_f32(state, action, logical_params):
    """Pure float32 reference matching the original PyTorch forward exactly."""
    w1, b1, w2, b2, w3, b3 = logical_params
    x = jnp.concatenate([state, action], axis=1)
    h = jax.nn.relu(x @ w1 + b1)
    h = jax.nn.relu(h @ w2 + b2)
    p = PHI * MAX_ACTION * jnp.tanh(h @ w3 + b3)
    return jnp.clip(p + action, -MAX_ACTION, MAX_ACTION)


if __name__ == "__main__":
    key = jax.random.PRNGKey(0)
    k_params, k_state, k_action, k_state2, k_action2 = jax.random.split(key, 5)

    logical_params, kernel_params = init_params(k_params)

    # Main test: flattened BCQ batch (num_states x num_samples), single tile.
    state = jax.random.normal(k_state, (BATCH, STATE_DIM), jnp.float32)
    action = jax.random.uniform(k_action, (BATCH, ACTION_DIM), jnp.float32,
                                -MAX_ACTION, MAX_ACTION)
    out = jax.block_until_ready(actor_forward(state, action, kernel_params))
    assert out.shape == (BATCH, ACTION_DIM)

    ref_bf16 = actor_reference_bf16(state, action, kernel_params)
    ref_f32 = actor_reference_f32(state, action, logical_params)
    assert jnp.allclose(out, ref_bf16, atol=1e-3, rtol=1e-3), \
        "mismatch vs bf16-matched reference"
    assert jnp.allclose(out, ref_f32, atol=2e-2, rtol=0.0), \
        "mismatch vs float32 reference (low-precision error too large)"

    # Secondary test: tiny odd batch exercises the batch-padding path.
    state2 = jax.random.normal(k_state2, (7, STATE_DIM), jnp.float32)
    action2 = jax.random.uniform(k_action2, (7, ACTION_DIM), jnp.float32,
                                 -MAX_ACTION, MAX_ACTION)
    out2 = jax.block_until_ready(actor_forward(state2, action2, kernel_params))
    ref2 = actor_reference_bf16(state2, action2, kernel_params)
    assert out2.shape == (7, ACTION_DIM)
    assert jnp.allclose(out2, ref2, atol=1e-3, rtol=1e-3), \
        "mismatch vs reference (small-batch path)"

    print("KERNEL_OK")
</pallas_src>

<mosaic_0001>
module attributes {stable_mosaic.version = 11 : i64} {
  func.func @actor_kernel(%arg0: i32, %arg1: memref<256x36xf32, #tpu.memory_space<vmem>>, %arg2: memref<36x512xbf16, #tpu.memory_space<vmem>>, %arg3: memref<1x512xf32, #tpu.memory_space<vmem>>, %arg4: memref<512x384xbf16, #tpu.memory_space<vmem>>, %arg5: memref<1x384xf32, #tpu.memory_space<vmem>>, %arg6: memref<384x8xbf16, #tpu.memory_space<vmem>>, %arg7: memref<1x8xf32, #tpu.memory_space<vmem>>, %arg8: memref<256x8xf32, #tpu.memory_space<vmem>>) attributes {dimension_semantics = [#tpu.dimension_semantics<arbitrary>], iteration_bounds = array<i64: 1>, scalar_prefetch = 0 : i64, scratch_operands = 0 : i64, tpu.core_type = #tpu.core_type<tc>, window_params = [{transform_indices = @transform_0, window_bounds = array<i64: 256, 36>}, {pipeline_mode = #tpu.pipeline_mode<synchronous>, transform_indices = @transform_1, window_bounds = array<i64: 36, 512>}, {pipeline_mode = #tpu.pipeline_mode<synchronous>, transform_indices = @transform_2, window_bounds = array<i64: 1, 512>}, {pipeline_mode = #tpu.pipeline_mode<synchronous>, transform_indices = @transform_3, window_bounds = array<i64: 512, 384>}, {pipeline_mode = #tpu.pipeline_mode<synchronous>, transform_indices = @transform_4, window_bounds = array<i64: 1, 384>}, {pipeline_mode = #tpu.pipeline_mode<synchronous>, transform_indices = @transform_5, window_bounds = array<i64: 384, 8>}, {pipeline_mode = #tpu.pipeline_mode<synchronous>, transform_indices = @transform_6, window_bounds = array<i64: 1, 8>}, {transform_indices = @transform_7, window_bounds = array<i64: 256, 8>}]} {
    %c0 = arith.constant 0 : index
    %c0_0 = arith.constant 0 : index
    %0 = vector.load %arg1[%c0, %c0_0] : memref<256x36xf32, #tpu.memory_space<vmem>>, vector<256x36xf32>
    %1 = vector.extract_strided_slice %0 {offsets = [0, 0], sizes = [256, 8], strides = [1, 1]} : vector<256x36xf32> to vector<256x8xf32>
    %2 = arith.truncf %0 : vector<256x36xf32> to vector<256x36xbf16>
    %c0_1 = arith.constant 0 : index
    %c0_2 = arith.constant 0 : index
    %3 = vector.load %arg2[%c0_1, %c0_2] : memref<36x512xbf16, #tpu.memory_space<vmem>>, vector<36x512xbf16>
    %cst = arith.constant dense<0.000000e+00> : vector<256x512xf32>
    %4 = tpu.matmul %2, %3, %cst {dimension_numbers = #tpu.dot_dimension_numbers<[1], [0], [0], [1], [0, 0, 1, 1], [], []>} : vector<256x36xbf16>, vector<36x512xbf16>, vector<256x512xf32> -> vector<256x512xf32>
    %c0_3 = arith.constant 0 : index
    %c0_4 = arith.constant 0 : index
    %5 = vector.load %arg3[%c0_3, %c0_4] : memref<1x512xf32, #tpu.memory_space<vmem>>, vector<1x512xf32>
    %6 = vector.broadcast %5 : vector<1x512xf32> to vector<256x512xf32>
    %7 = arith.addf %4, %6 : vector<256x512xf32>
    %cst_5 = arith.constant 0.000000e+00 : f32
    %8 = vector.broadcast %cst_5 : f32 to vector<256x512xf32>
    %9 = arith.maximumf %7, %8 : vector<256x512xf32>
    %10 = arith.truncf %9 : vector<256x512xf32> to vector<256x512xbf16>
    %c0_6 = arith.constant 0 : index
    %c0_7 = arith.constant 0 : index
    %11 = vector.load %arg4[%c0_6, %c0_7] : memref<512x384xbf16, #tpu.memory_space<vmem>>, vector<512x384xbf16>
    %cst_8 = arith.constant dense<0.000000e+00> : vector<256x384xf32>
    %12 = tpu.matmul %10, %11, %cst_8 {dimension_numbers = #tpu.dot_dimension_numbers<[1], [0], [0], [1], [0, 0, 1, 1], [], []>} : vector<256x512xbf16>, vector<512x384xbf16>, vector<256x384xf32> -> vector<256x384xf32>
    %c0_9 = arith.constant 0 : index
    %c0_10 = arith.constant 0 : index
    %13 = vector.load %arg5[%c0_9, %c0_10] : memref<1x384xf32, #tpu.memory_space<vmem>>, vector<1x384xf32>
    %14 = vector.broadcast %13 : vector<1x384xf32> to vector<256x384xf32>
    %15 = arith.addf %12, %14 : vector<256x384xf32>
    %cst_11 = arith.constant 0.000000e+00 : f32
    %16 = vector.broadcast %cst_11 : f32 to vector<256x384xf32>
    %17 = arith.maximumf %15, %16 : vector<256x384xf32>
    %18 = arith.truncf %17 : vector<256x384xf32> to vector<256x384xbf16>
    %c0_12 = arith.constant 0 : index
    %c0_13 = arith.constant 0 : index
    %19 = vector.load %arg6[%c0_12, %c0_13] : memref<384x8xbf16, #tpu.memory_space<vmem>>, vector<384x8xbf16>
    %cst_14 = arith.constant dense<0.000000e+00> : vector<256x8xf32>
    %20 = tpu.matmul %18, %19, %cst_14 {dimension_numbers = #tpu.dot_dimension_numbers<[1], [0], [0], [1], [0, 0, 1, 1], [], []>} : vector<256x384xbf16>, vector<384x8xbf16>, vector<256x8xf32> -> vector<256x8xf32>
    %c0_15 = arith.constant 0 : index
    %c0_16 = arith.constant 0 : index
    %21 = vector.load %arg7[%c0_15, %c0_16] : memref<1x8xf32, #tpu.memory_space<vmem>>, vector<1x8xf32>
    %22 = vector.broadcast %21 : vector<1x8xf32> to vector<256x8xf32>
    %23 = arith.addf %20, %22 : vector<256x8xf32>
    %24 = math.tanh %23 : vector<256x8xf32>
    %cst_17 = arith.constant 5.000000e-02 : f32
    %25 = vector.broadcast %cst_17 : f32 to vector<256x8xf32>
    %26 = arith.mulf %25, %24 : vector<256x8xf32>
    %27 = arith.addf %26, %1 : vector<256x8xf32>
    %cst_18 = arith.constant -1.000000e+00 : f32
    %cst_19 = arith.constant 1.000000e+00 : f32
    %28 = vector.broadcast %cst_18 : f32 to vector<256x8xf32>
    %29 = arith.maximumf %28, %27 : vector<256x8xf32>
    %30 = vector.broadcast %cst_19 : f32 to vector<256x8xf32>
    %31 = arith.minimumf %30, %29 : vector<256x8xf32>
    %c0_20 = arith.constant 0 : index
    %c0_21 = arith.constant 0 : index
    %32 = vector.load %arg8[%c0_20, %c0_21] : memref<256x8xf32, #tpu.memory_space<vmem>>, vector<256x8xf32>
    tpu.vector_store %arg8[%c0_20, %c0_21], %31 {strides = array<i32>} : memref<256x8xf32, #tpu.memory_space<vmem>>, vector<256x8xf32>,
    return
  }
  func.func @transform_0(%arg0: i32) -> (i32, i32) {
    %c0_i32 = arith.constant 0 : i32
    %c0_i32_0 = arith.constant 0 : i32
    return %arg0, %c0_i32 : i32, i32
  }
  func.func @transform_1(%arg0: i32) -> (i32, i32) {
    %c0_i32 = arith.constant 0 : i32
    %c0_i32_0 = arith.constant 0 : i32
    %c0_i32_1 = arith.constant 0 : i32
    return %c0_i32, %c0_i32_0 : i32, i32
  }
  func.func @transform_2(%arg0: i32) -> (i32, i32) {
    %c0_i32 = arith.constant 0 : i32
    %c0_i32_0 = arith.constant 0 : i32
    %c0_i32_1 = arith.constant 0 : i32
    return %c0_i32, %c0_i32_0 : i32, i32
  }
  func.func @transform_3(%arg0: i32) -> (i32, i32) {
    %c0_i32 = arith.constant 0 : i32
    %c0_i32_0 = arith.constant 0 : i32
    %c0_i32_1 = arith.constant 0 : i32
    return %c0_i32, %c0_i32_0 : i32, i32
  }
  func.func @transform_4(%arg0: i32) -> (i32, i32) {
    %c0_i32 = arith.constant 0 : i32
    %c0_i32_0 = arith.constant 0 : i32
    %c0_i32_1 = arith.constant 0 : i32
    return %c0_i32, %c0_i32_0 : i32, i32
  }
  func.func @transform_5(%arg0: i32) -> (i32, i32) {
    %c0_i32 = arith.constant 0 : i32
    %c0_i32_0 = arith.constant 0 : i32
    %c0_i32_1 = arith.constant 0 : i32
    return %c0_i32, %c0_i32_0 : i32, i32
  }
  func.func @transform_6(%arg0: i32) -> (i32, i32) {
    %c0_i32 = arith.constant 0 : i32
    %c0_i32_0 = arith.constant 0 : i32
    %c0_i32_1 = arith.constant 0 : i32
    return %c0_i32, %c0_i32_0 : i32, i32
  }
  func.func @transform_7(%arg0: i32) -> (i32, i32) {
    %c0_i32 = arith.constant 0 : i32
    %c0_i32_0 = arith.constant 0 : i32
    return %arg0, %c0_i32 : i32, i32
  }
}

</mosaic_0001>

<llo_original>
// kernel: actor_forward.1
$region0: #{actor_forward.1}
  #allocation0 [shape = 'u32[]', space=smem, size = 0x4, offset = 0x4, fixed_abs, tag = 'smem constant byte address 0x4 - core index']
  #allocation1 [shape = 'u32[144,128]{1,0:T(1,128)}', space=vmem, size = 0x12000, scoped, tag = 'internal scratch']
  %s0 = inlined_call_operand.vmem [shape: f32[256,36], index: 0, kind: input, shape index: {}]
  %s1 = inlined_call_operand.vmem [shape: bf16[36,512], index: 1, kind: input, shape index: {}]
  %s2 = inlined_call_operand.vmem [shape: f32[1,512], index: 2, kind: input, shape index: {}]
  %s3 = inlined_call_operand.hbm [shape: bf16[512,384], index: 3, kind: input, shape index: {}]
  %s4 = inlined_call_operand.vmem [shape: f32[1,384], index: 4, kind: input, shape index: {}]
  %s5 = inlined_call_operand.vmem [shape: bf16[384,8], index: 5, kind: input, shape index: {}]
  %s6 = inlined_call_operand.vmem [shape: f32[1,8], index: 6, kind: input, shape index: {}]
  %s7 = inlined_call_operand.vmem [shape: f32[256,8], index: 7, kind: output, shape index: {}]
  %s8 = sld [smem:[#allocation0]]
  $region42: #{actor_forward.1} parent=0
    _
  %s10 = ssub.s32 1, %s8
  %s11 = scalar_select 0, %s10, %s8
  $region1: #{actor_forward.1} parent=0
    #allocation2 [shape = 'u8[393216]{0}', space=vmem, size = 0x60000, scoped, tag = 'input window, operand 3, single buffered']
    #allocation3 [shape = 's32[1]{0}', space=sflag, size = 0x4, scoped, tag = 'scoped memory for actor_forward.1']
    %12 = vsyncpa [#allocation3], 0
    // Predicated region
    $region2: #{actor_forward.1} parent=1 // pred_check
      _
    $region3: #{actor_forward.1} parent=1 // pred_check_branch
      %14 = sbr.rel (0) target = $region5
    $region4: #{actor_forward.1} parent=1 // pred_region
      _
    $region5: #{actor_forward.1} parent=1 // pred_fallthru
      _
    // Predicated region
    $region6: #{actor_forward.1} parent=1 // pred_check
      _
    $region7: #{actor_forward.1} parent=1 // pred_check_branch
      %16 = sbr.rel (0) target = $region9
    $region8: #{actor_forward.1} parent=1 // pred_region
      _
    $region9: #{actor_forward.1} parent=1 // pred_fallthru
      _
    // Predicated region
    $region10: #{actor_forward.1} parent=1 // pred_check
      _
    $region11: #{actor_forward.1} parent=1 // pred_check_branch
      %18 = sbr.rel (0) target = $region13
    $region12: #{actor_forward.1} parent=1 // pred_region
      _
    $region13: #{actor_forward.1} parent=1 // pred_fallthru
      _
    // Predicated region
    $region14: #{actor_forward.1} parent=1 // pred_check
      _
    $region15: #{actor_forward.1} parent=1 // pred_check_branch
      %20 = sbr.rel (0) target = $region17
    $region16: #{actor_forward.1} parent=1 // pred_region
      %s22 = ssub.s32 12288, 12288
      %23 = vsyncadd [#allocation3], %s22
      %s24 = sshll.u32 [#allocation2], 4
      %s25 = int_to_ptr.vmem [resolvable:$true] %s24
      %30 = dma.hbm_to_vmem [thread:$0]  %s3, 12288, %s25, [#allocation3], 192, 192, 12
    $region17: #{actor_forward.1} parent=1 // pred_fallthru
      _
    // Predicated region
    $region18: #{actor_forward.1} parent=1 // pred_check
      _
    $region19: #{actor_forward.1} parent=1 // pred_check_branch
      %32 = sbr.rel (0) target = $region21
    $region20: #{actor_forward.1} parent=1 // pred_region
      _
    $region21: #{actor_forward.1} parent=1 // pred_fallthru
      _
    // Predicated region
    $region22: #{actor_forward.1} parent=1 // pred_check
      _
    $region23: #{actor_forward.1} parent=1 // pred_check_branch
      %34 = sbr.rel (0) target = $region25
    $region24: #{actor_forward.1} parent=1 // pred_region
      _
    $region25: #{actor_forward.1} parent=1 // pred_fallthru
      _
    // Predicated region
    $region26: #{actor_forward.1} parent=1 // pred_check
      _
    $region27: #{actor_forward.1} parent=1 // pred_check_branch
      %36 = sbr.rel (0) target = $region29
    $region28: #{actor_forward.1} parent=1 // pred_region
      _
    $region29: #{actor_forward.1} parent=1 // pred_fallthru
      _
    // Predicated region
    $region30: #{actor_forward.1} parent=1 // pred_check
      _
    $region31: #{actor_forward.1} parent=1 // pred_check_branch
      %38 = sbr.rel (0) target = $region33
    $region32: #{actor_forward.1} parent=1 // pred_region
      %39 = dma.done [#allocation3], 12288
    $region33: #{actor_forward.1} parent=1 // pred_fallthru
      _
    %v41 = vld [vmem:[%s0] sm:$0xff]
    %v42 = vld [vmem:[%s0 + $0x8] sm:$0xff]
    %v43 = vld [vmem:[%s0 + $0x10] sm:$0xff]
    %v44 = vld [vmem:[%s0 + $0x18] sm:$0xff]
    %v45 = vld [vmem:[%s0 + $0x20] sm:$0xff]
    %v46 = vld [vmem:[%s0 + $0x28] sm:$0xff]
    %v47 = vld [vmem:[%s0 + $0x30] sm:$0xff]
    %v48 = vld [vmem:[%s0 + $0x38] sm:$0xff]
    %v49 = vld [vmem:[%s0 + $0x40] sm:$0xff]
    %v50 = vld [vmem:[%s0 + $0x48] sm:$0xff]
    %v51 = vld [vmem:[%s0 + $0x50] sm:$0xff]
    %v52 = vld [vmem:[%s0 + $0x58] sm:$0xff]
    %v53 = vld [vmem:[%s0 + $0x60] sm:$0xff]
    %v54 = vld [vmem:[%s0 + $0x68] sm:$0xff]
    %v55 = vld [vmem:[%s0 + $0x70] sm:$0xff]
    %v56 = vld [vmem:[%s0 + $0x78] sm:$0xff]
    %v57 = vld [vmem:[%s0 + $0x80] sm:$0xff]
    %v58 = vld [vmem:[%s0 + $0x88] sm:$0xff]
    %v59 = vld [vmem:[%s0 + $0x90] sm:$0xff]
    %v60 = vld [vmem:[%s0 + $0x98] sm:$0xff]
    %v61 = vld [vmem:[%s0 + $0xa0] sm:$0xff]
    %v62 = vld [vmem:[%s0 + $0xa8] sm:$0xff]
    %v63 = vld [vmem:[%s0 + $0xb0] sm:$0xff]
    %v64 = vld [vmem:[%s0 + $0xb8] sm:$0xff]
    %v65 = vld [vmem:[%s0 + $0xc0] sm:$0xff]
    %v66 = vld [vmem:[%s0 + $0xc8] sm:$0xff]
    %v67 = vld [vmem:[%s0 + $0xd0] sm:$0xff]
    %v68 = vld [vmem:[%s0 + $0xd8] sm:$0xff]
    %v69 = vld [vmem:[%s0 + $0xe0] sm:$0xff]
    %v70 = vld [vmem:[%s0 + $0xe8] sm:$0xff]
    %v71 = vld [vmem:[%s0 + $0xf0] sm:$0xff]
    %v72 = vld [vmem:[%s0 + $0xf8] sm:$0xff]
    %v73 = vpack.c.bf16 %v42, %v41
    %v74 = vpack.c.bf16 %v44, %v43
    %v75 = vpack.c.bf16 %v46, %v45
    %v76 = vpack.c.bf16 %v48, %v47
    %v77 = vpack.c.bf16 %v50, %v49
    %v78 = vpack.c.bf16 %v52, %v51
    %v79 = vpack.c.bf16 %v54, %v53
    %v80 = vpack.c.bf16 %v56, %v55
    %v81 = vpack.c.bf16 %v58, %v57
    %v82 = vpack.c.bf16 %v60, %v59
    %v83 = vpack.c.bf16 %v62, %v61
    %v84 = vpack.c.bf16 %v64, %v63
    %v85 = vpack.c.bf16 %v66, %v65
    %v86 = vpack.c.bf16 %v68, %v67
    %v87 = vpack.c.bf16 %v70, %v69
    %v88 = vpack.c.bf16 %v72, %v71
    %v89 = vld [vmem:[%s1] sm:$0xff]
    %v90 = vld [vmem:[%s1 + $0x8] sm:$0xff]
    %v91 = vld [vmem:[%s1 + $0x10] sm:$0xff]
    %v92 = vld [vmem:[%s1 + $0x18] sm:$0xff]
    %v93 = vld [vmem:[%s1 + $0x20] sm:$0xff]
    %v94 = vld [vmem:[%s1 + $0x28] sm:$0xff]
    %v95 = vld [vmem:[%s1 + $0x30] sm:$0xff]
    %v96 = vld [vmem:[%s1 + $0x38] sm:$0xff]
    %v97 = vld [vmem:[%s1 + $0x40] sm:$0x33]
    %v98 = vld [vmem:[%s1 + $0x48] sm:$0x33]
    %v99 = vld [vmem:[%s2] sm:$0xf]
    %v101 = vlaneseq
    %v102 = vshrl.u32 %v101, 7
    %v103 = vsub.s32 0, %v102
    %v104 = vrot.slane %v99, %v103
    %v105 = vlaneseq
    %v106 = vshrl.u32 %v105, 7
    %v107 = vsub.s32 1, %v106
    %v108 = vrot.slane %v99, %v107
    %v109 = vlaneseq
    %v110 = vshrl.u32 %v109, 7
    %v111 = vsub.s32 2, %v110
    %v112 = vrot.slane %v99, %v111
    %v113 = vlaneseq
    %v114 = vshrl.u32 %v113, 7
    %v115 = vsub.s32 3, %v114
    %v116 = vrot.slane %v99, %v115
    %v131 = vunpack.c.l.b16 %v89
    %v132 = vunpack.c.h.b16 %v89
    %v133 = vunpack.c.l.b16 %v90
    %v134 = vunpack.c.h.b16 %v90
    %v135 = vunpack.c.l.b16 %v91
    %v136 = vunpack.c.h.b16 %v91
    %v137 = vunpack.c.l.b16 %v92
    %v138 = vunpack.c.h.b16 %v92
    %v139 = vunpack.c.l.b16 %v93
    %v140 = vunpack.c.h.b16 %v93
    %v141 = vunpack.c.l.b16 %v94
    %v142 = vunpack.c.h.b16 %v94
    %v143 = vunpack.c.l.b16 %v95
    %v144 = vunpack.c.h.b16 %v95
    %v145 = vunpack.c.l.b16 %v96
    %v146 = vunpack.c.h.b16 %v96
    %v147 = vunpack.c.l.b16 %v97
    %v148 = vunpack.c.h.b16 %v97
    %v149 = vunpack.c.l.b16 %v98
    %v150 = vunpack.c.h.b16 %v98
    %v151 = vpack.c.b16 %v135, %v131
    %v152 = vpack.c.b16 %v136, %v132
    %v153 = vpack.c.b16 %v137, %v133
    %v154 = vpack.c.b16 %v138, %v134
    %v155 = vpack.c.b16 %v143, %v139
    %v156 = vpack.c.b16 %v144, %v140
    %v157 = vpack.c.b16 %v145, %v141
    %v158 = vpack.c.b16 %v146, %v142
    %v159 = vpack.c.b16 %v147, %v147
    %v160 = vpack.c.b16 %v148, %v148
    %v161 = vpack.c.b16 %v149, %v149
    %v162 = vpack.c.b16 %v150, %v150
    %vm171 = vcmask 293888
    %v173 = vsel %vm171, %v73, 0
    %v176 = vsel %vm171, %v74, 0
    %v179 = vsel %vm171, %v75, 0
    %v182 = vsel %vm171, %v76, 0
    %v185 = vsel %vm171, %v77, 0
    %v188 = vsel %vm171, %v78, 0
    %v191 = vsel %vm171, %v79, 0
    %v194 = vsel %vm171, %v80, 0
    %v197 = vsel %vm171, %v81, 0
    %v200 = vsel %vm171, %v82, 0
    %v203 = vsel %vm171, %v83, 0
    %v206 = vsel %vm171, %v84, 0
    %v209 = vsel %vm171, %v85, 0
    %v212 = vsel %vm171, %v86, 0
    %v215 = vsel %vm171, %v87, 0
    %v218 = vsel %vm171, %v88, 0
    %vm220 = vcmask 1041408
    %v222 = vsel %vm220, %v159, 0
    %v225 = vsel %vm220, %v160, 0
    %v228 = vsel %vm220, %v161, 0
    %v231 = vsel %vm220, %v162, 0
    %233 = vmatprep.subr.bf16.mxu0 0
    %234 = vmatpush1.bf16.msra.mxu0 0
    %235 = vmatprep.subr.bf16.mxu0 0
    %236 = vmatpush1.bf16.msra.mxu0 0
    %237 = vmatprep.subr.bf16.mxu0 0
    %238 = vmatpush1.bf16.msra.mxu0 0
    %239 = vmatprep.subr.bf16.mxu0 0
    %240 = vmatpush1.bf16.msra.mxu0 0
    %241 = vmatprep.subr.bf16.mxu0 0
    %242 = vmatpush1.bf16.msra.mxu0 0
    %243 = vmatprep.subr.bf16.mxu0 %v225
    %244 = vmatpush1.bf16.msra.mxu0 %v222
    %245 = vmatprep.subr.bf16.mxu0 %v156
    %246 = vmatpush1.bf16.msra.mxu0 %v155
    %247 = vmatprep.subr.bf16.mxu0 %v152
    %248 = vmatpush1.bf16.msra.mxu0 %v151
    %249 = vmatprep.subr.bf16.mxu0 0
    %250 = vmatpush2.bf16.msra.mxu0 0
    %251 = vmatprep.subr.bf16.mxu0 0
    %252 = vmatpush2.bf16.msra.mxu0 0
    %253 = vmatprep.subr.bf16.mxu0 0
    %254 = vmatpush2.bf16.msra.mxu0 0
    %255 = vmatprep.subr.bf16.mxu0 0
    %256 = vmatpush2.bf16.msra.mxu0 0
    %257 = vmatprep.subr.bf16.mxu0 0
    %258 = vmatpush2.bf16.msra.mxu0 0
    %259 = vmatprep.subr.bf16.mxu0 0
    %260 = vmatpush2.bf16.msra.mxu0 0
    %261 = vmatprep.subr.bf16.mxu0 0
    %262 = vmatpush2.bf16.msra.mxu0 0
    %263 = vmatprep.subr.bf16.mxu0 0
    %264 = vmatpush2.bf16.msra.mxu0 0
    %265 = vmatprep.mubr.bf16.mxu0 0
    %266 = vmatmul.mubr.bf16.gmra.mxu0 %v173
    %v267 = vpop.f32.mrf.mxu0
    %v268 = vadd.f32 %v104, %v267
    %v269 = vpop.f32.mrf.mxu0
    %v270 = vadd.f32 %v108, %v269
    %v271 = vpop.f32.mrf.mxu0
    %v272 = vadd.f32 %v104, %v271
    %v273 = vpop.f32.mrf.mxu0
    %v274 = vadd.f32 %v108, %v273
    %275 = vmatprep.mubr.bf16.mxu0 0
    %276 = vmatmul.mubr.bf16.gmra.mxu0 %v176
    %v277 = vpop.f32.mrf.mxu0
    %v278 = vadd.f32 %v104, %v277
    %v279 = vpop.f32.mrf.mxu0
    %v280 = vadd.f32 %v108, %v279
    %v281 = vpop.f32.mrf.mxu0
    %v282 = vadd.f32 %v104, %v281
    %v283 = vpop.f32.mrf.mxu0
    %v284 = vadd.f32 %v108, %v283
    %285 = vmatprep.mubr.bf16.mxu0 0
    %286 = vmatmul.mubr.bf16.gmra.mxu0 %v179
    %v287 = vpop.f32.mrf.mxu0
    %v288 = vadd.f32 %v104, %v287
    %v289 = vpop.f32.mrf.mxu0
    %v290 = vadd.f32 %v108, %v289
    %v291 = vpop.f32.mrf.mxu0
    %v292 = vadd.f32 %v104, %v291
    %v293 = vpop.f32.mrf.mxu0
    %v294 = vadd.f32 %v108, %v293
    %295 = vmatprep.mubr.bf16.mxu0 0
    %296 = vmatmul.mubr.bf16.gmra.mxu0 %v182
    %v297 = vpop.f32.mrf.mxu0
    %v298 = vadd.f32 %v104, %v297
    %v299 = vpop.f32.mrf.mxu0
    %v300 = vadd.f32 %v108, %v299
    %v301 = vpop.f32.mrf.mxu0
    %v302 = vadd.f32 %v104, %v301
    %v303 = vpop.f32.mrf.mxu0
    %v304 = vadd.f32 %v108, %v303
    %305 = vmatprep.mubr.bf16.mxu0 0
    %306 = vmatmul.mubr.bf16.gmra.mxu0 %v185
    %v307 = vpop.f32.mrf.mxu0
    %v308 = vadd.f32 %v104, %v307
    %v309 = vpop.f32.mrf.mxu0
    %v310 = vadd.f32 %v108, %v309
    %v311 = vpop.f32.mrf.mxu0
    %v312 = vadd.f32 %v104, %v311
    %v313 = vpop.f32.mrf.mxu0
    %v314 = vadd.f32 %v108, %v313
    %315 = vmatprep.mubr.bf16.mxu0 0
    %316 = vmatmul.mubr.bf16.gmra.mxu0 %v188
    %v317 = vpop.f32.mrf.mxu0
    %v318 = vadd.f32 %v104, %v317
    %v319 = vpop.f32.mrf.mxu0
    %v320 = vadd.f32 %v108, %v319
    %v321 = vpop.f32.mrf.mxu0
    %v322 = vadd.f32 %v104, %v321
    %v323 = vpop.f32.mrf.mxu0
    %v324 = vadd.f32 %v108, %v323
    %325 = vmatprep.mubr.bf16.mxu0 0
    %326 = vmatmul.mubr.bf16.gmra.mxu0 %v191
    %v327 = vpop.f32.mrf.mxu0
    %v328 = vadd.f32 %v104, %v327
    %v329 = vpop.f32.mrf.mxu0
    %v330 = vadd.f32 %v108, %v329
    %v331 = vpop.f32.mrf.mxu0
    %v332 = vadd.f32 %v104, %v331
    %v333 = vpop.f32.mrf.mxu0
    %v334 = vadd.f32 %v108, %v333
    %335 = vmatprep.mubr.bf16.mxu0 0
    %336 = vmatmul.mubr.bf16.gmra.mxu0 %v194
    %v337 = vpop.f32.mrf.mxu0
    %v338 = vadd.f32 %v104, %v337
    %v339 = vpop.f32.mrf.mxu0
    %v340 = vadd.f32 %v108, %v339
    %v341 = vpop.f32.mrf.mxu0
    %v342 = vadd.f32 %v104, %v341
    %v343 = vpop.f32.mrf.mxu0
    %v344 = vadd.f32 %v108, %v343
    %345 = vmatprep.mubr.bf16.mxu0 0
    %346 = vmatmul.mubr.bf16.gmra.mxu0 %v197
    %v347 = vpop.f32.mrf.mxu0
    %v348 = vadd.f32 %v104, %v347
    %v349 = vpop.f32.mrf.mxu0
    %v350 = vadd.f32 %v108, %v349
    %v351 = vpop.f32.mrf.mxu0
    %v352 = vadd.f32 %v104, %v351
    %v353 = vpop.f32.mrf.mxu0
    %v354 = vadd.f32 %v108, %v353
    %355 = vmatprep.mubr.bf16.mxu0 0
    %356 = vmatmul.mubr.bf16.gmra.mxu0 %v200
    %v357 = vpop.f32.mrf.mxu0
    %v358 = vadd.f32 %v104, %v357
    %v359 = vpop.f32.mrf.mxu0
    %v360 = vadd.f32 %v108, %v359
    %v361 = vpop.f32.mrf.mxu0
    %v362 = vadd.f32 %v104, %v361
    %v363 = vpop.f32.mrf.mxu0
    %v364 = vadd.f32 %v108, %v363
    %365 = vmatprep.mubr.bf16.mxu0 0
    %366 = vmatmul.mubr.bf16.gmra.mxu0 %v203
    %v367 = vpop.f32.mrf.mxu0
    %v368 = vadd.f32 %v104, %v367
    %v369 = vpop.f32.mrf.mxu0
    %v370 = vadd.f32 %v108, %v369
    %v371 = vpop.f32.mrf.mxu0
    %v372 = vadd.f32 %v104, %v371
    %v373 = vpop.f32.mrf.mxu0
    %v374 = vadd.f32 %v108, %v373
    %375 = vmatprep.mubr.bf16.mxu0 0
    %376 = vmatmul.mubr.bf16.gmra.mxu0 %v206
    %v377 = vpop.f32.mrf.mxu0
    %v378 = vadd.f32 %v104, %v377
    %v379 = vpop.f32.mrf.mxu0
    %v380 = vadd.f32 %v108, %v379
    %v381 = vpop.f32.mrf.mxu0
    %v382 = vadd.f32 %v104, %v381
    %v383 = vpop.f32.mrf.mxu0
    %v384 = vadd.f32 %v108, %v383
    %385 = vmatprep.mubr.bf16.mxu0 0
    %386 = vmatmul.mubr.bf16.gmra.mxu0 %v209
    %v387 = vpop.f32.mrf.mxu0
    %v388 = vadd.f32 %v104, %v387
    %v389 = vpop.f32.mrf.mxu0
    %v390 = vadd.f32 %v108, %v389
    %v391 = vpop.f32.mrf.mxu0
    %v392 = vadd.f32 %v104, %v391
    %v393 = vpop.f32.mrf.mxu0
    %v394 = vadd.f32 %v108, %v393
    %395 = vmatprep.mubr.bf16.mxu0 0
    %396 = vmatmul.mubr.bf16.gmra.mxu0 %v212
    %v397 = vpop.f32.mrf.mxu0
    %v398 = vadd.f32 %v104, %v397
    %v399 = vpop.f32.mrf.mxu0
    %v400 = vadd.f32 %v108, %v399
    %v401 = vpop.f32.mrf.mxu0
    %v402 = vadd.f32 %v104, %v401
    %v403 = vpop.f32.mrf.mxu0
    %v404 = vadd.f32 %v108, %v403
    %405 = vmatprep.mubr.bf16.mxu0 0
    %406 = vmatmul.mubr.bf16.gmra.mxu0 %v215
    %v407 = vpop.f32.mrf.mxu0
    %v408 = vadd.f32 %v104, %v407
    %v409 = vpop.f32.mrf.mxu0
    %v410 = vadd.f32 %v108, %v409
    %v411 = vpop.f32.mrf.mxu0
    %v412 = vadd.f32 %v104, %v411
    %v413 = vpop.f32.mrf.mxu0
    %v414 = vadd.f32 %v108, %v413
    %415 = vmatprep.mubr.bf16.mxu0 0
    %416 = vmatmul.mubr.bf16.gmra.mxu0 %v218
    %v417 = vpop.f32.mrf.mxu0
    %v418 = vadd.f32 %v104, %v417
    %v419 = vpop.f32.mrf.mxu0
    %v420 = vadd.f32 %v108, %v419
    %v421 = vpop.f32.mrf.mxu0
    %v422 = vadd.f32 %v104, %v421
    %v423 = vpop.f32.mrf.mxu0
    %v424 = vadd.f32 %v108, %v423
    %425 = vdwg.mxu0
    %426 = vmatprep.subr.bf16.mxu0 0
    %427 = vmatpush1.bf16.msra.mxu0 0
    %428 = vmatprep.subr.bf16.mxu0 0
    %429 = vmatpush1.bf16.msra.mxu0 0
    %430 = vmatprep.subr.bf16.mxu0 0
    %431 = vmatpush1.bf16.msra.mxu0 0
    %432 = vmatprep.subr.bf16.mxu0 0
    %433 = vmatpush1.bf16.msra.mxu0 0
    %434 = vmatprep.subr.bf16.mxu0 0
    %435 = vmatpush1.bf16.msra.mxu0 0
    %436 = vmatprep.subr.bf16.mxu0 %v231
    %437 = vmatpush1.bf16.msra.mxu0 %v228
    %438 = vmatprep.subr.bf16.mxu0 %v158
    %439 = vmatpush1.bf16.msra.mxu0 %v157
    %440 = vmatprep.subr.bf16.mxu0 %v154
    %441 = vmatpush1.bf16.msra.mxu0 %v153
    %442 = vmatprep.subr.bf16.mxu0 0
    %443 = vmatpush2.bf16.msra.mxu0 0
    %444 = vmatprep.subr.bf16.mxu0 0
    %445 = vmatpush2.bf16.msra.mxu0 0
    %446 = vmatprep.subr.bf16.mxu0 0
    %447 = vmatpush2.bf16.msra.mxu0 0
    %448 = vmatprep.subr.bf16.mxu0 0
    %449 = vmatpush2.bf16.msra.mxu0 0
    %450 = vmatprep.subr.bf16.mxu0 0
    %451 = vmatpush2.bf16.msra.mxu0 0
    %452 = vmatprep.subr.bf16.mxu0 0
    %453 = vmatpush2.bf16.msra.mxu0 0
    %454 = vmatprep.subr.bf16.mxu0 0
    %455 = vmatpush2.bf16.msra.mxu0 0
    %456 = vmatprep.subr.bf16.mxu0 0
    %457 = vmatpush2.bf16.msra.mxu0 0
    %458 = vmatprep.mubr.bf16.mxu0 0
    %459 = vmatmul.mubr.bf16.gmra.mxu0 %v173
    %v460 = vpop.f32.mrf.mxu0
    %v461 = vadd.f32 %v112, %v460
    %v462 = vpop.f32.mrf.mxu0
    %v463 = vadd.f32 %v116, %v462
    %v464 = vpop.f32.mrf.mxu0
    %v465 = vadd.f32 %v112, %v464
    %v466 = vpop.f32.mrf.mxu0
    %v467 = vadd.f32 %v116, %v466
    %468 = vmatprep.mubr.bf16.mxu0 0
    %469 = vmatmul.mubr.bf16.gmra.mxu0 %v176
    %v470 = vpop.f32.mrf.mxu0
    %v471 = vadd.f32 %v112, %v470
    %v472 = vpop.f32.mrf.mxu0
    %v473 = vadd.f32 %v116, %v472
    %v474 = vpop.f32.mrf.mxu0
    %v475 = vadd.f32 %v112, %v474
    %v476 = vpop.f32.mrf.mxu0
    %v477 = vadd.f32 %v116, %v476
    %478 = vmatprep.mubr.bf16.mxu0 0
    %479 = vmatmul.mubr.bf16.gmra.mxu0 %v179
    %v480 = vpop.f32.mrf.mxu0
    %v481 = vadd.f32 %v112, %v480
    %v482 = vpop.f32.mrf.mxu0
    %v483 = vadd.f32 %v116, %v482
    %v484 = vpop.f32.mrf.mxu0
    %v485 = vadd.f32 %v112, %v484
    %v486 = vpop.f32.mrf.mxu0
    %v487 = vadd.f32 %v116, %v486
    %488 = vmatprep.mubr.bf16.mxu0 0
    %489 = vmatmul.mubr.bf16.gmra.mxu0 %v182
    %v490 = vpop.f32.mrf.mxu0
    %v491 = vadd.f32 %v112, %v490
    %v492 = vpop.f32.mrf.mxu0
    %v493 = vadd.f32 %v116, %v492
    %v494 = vpop.f32.mrf.mxu0
    %v495 = vadd.f32 %v112, %v494
    %v496 = vpop.f32.mrf.mxu0
    %v497 = vadd.f32 %v116, %v496
    %498 = vmatprep.mubr.bf16.mxu0 0
    %499 = vmatmul.mubr.bf16.gmra.mxu0 %v185
    %v500 = vpop.f32.mrf.mxu0
    %v501 = vadd.f32 %v112, %v500
    %v502 = vpop.f32.mrf.mxu0
    %v503 = vadd.f32 %v116, %v502
    %v504 = vpop.f32.mrf.mxu0
    %v505 = vadd.f32 %v112, %v504
    %v506 = vpop.f32.mrf.mxu0
    %v507 = vadd.f32 %v116, %v506
    %508 = vmatprep.mubr.bf16.mxu0 0
    %509 = vmatmul.mubr.bf16.gmra.mxu0 %v188
    %v510 = vpop.f32.mrf.mxu0
    %v511 = vadd.f32 %v112, %v510
    %v512 = vpop.f32.mrf.mxu0
    %v513 = vadd.f32 %v116, %v512
    %v514 = vpop.f32.mrf.mxu0
    %v515 = vadd.f32 %v112, %v514
    %v516 = vpop.f32.mrf.mxu0
    %v517 = vadd.f32 %v116, %v516
    %518 = vmatprep.mubr.bf16.mxu0 0
    %519 = vmatmul.mubr.bf16.gmra.mxu0 %v191
    %v520 = vpop.f32.mrf.mxu0
    %v521 = vadd.f32 %v112, %v520
    %v522 = vpop.f32.mrf.mxu0
    %v523 = vadd.f32 %v116, %v522
    %v524 = vpop.f32.mrf.mxu0
    %v525 = vadd.f32 %v112, %v524
    %v526 = vpop.f32.mrf.mxu0
    %v527 = vadd.f32 %v116, %v526
    %528 = vmatprep.mubr.bf16.mxu0 0
    %529 = vmatmul.mubr.bf16.gmra.mxu0 %v194
    %v530 = vpop.f32.mrf.mxu0
    %v531 = vadd.f32 %v112, %v530
    %v532 = vpop.f32.mrf.mxu0
    %v533 = vadd.f32 %v116, %v532
    %v534 = vpop.f32.mrf.mxu0
    %v535 = vadd.f32 %v112, %v534
    %v536 = vpop.f32.mrf.mxu0
    %v537 = vadd.f32 %v116, %v536
    %538 = vmatprep.mubr.bf16.mxu0 0
    %539 = vmatmul.mubr.bf16.gmra.mxu0 %v197
    %v540 = vpop.f32.mrf.mxu0
    %v541 = vadd.f32 %v112, %v540
    %v542 = vpop.f32.mrf.mxu0
    %v543 = vadd.f32 %v116, %v542
    %v544 = vpop.f32.mrf.mxu0
    %v545 = vadd.f32 %v112, %v544
    %v546 = vpop.f32.mrf.mxu0
    %v547 = vadd.f32 %v116, %v546
    %548 = vmatprep.mubr.bf16.mxu0 0
    %549 = vmatmul.mubr.bf16.gmra.mxu0 %v200
    %v550 = vpop.f32.mrf.mxu0
    %v551 = vadd.f32 %v112, %v550
    %v552 = vpop.f32.mrf.mxu0
    %v553 = vadd.f32 %v116, %v552
    %v554 = vpop.f32.mrf.mxu0
    %v555 = vadd.f32 %v112, %v554
    %v556 = vpop.f32.mrf.mxu0
    %v557 = vadd.f32 %v116, %v556
    %558 = vmatprep.mubr.bf16.mxu0 0
    %559 = vmatmul.mubr.bf16.gmra.mxu0 %v203
    %v560 = vpop.f32.mrf.mxu0
    %v561 = vadd.f32 %v112, %v560
    %v562 = vpop.f32.mrf.mxu0
    %v563 = vadd.f32 %v116, %v562
    %v564 = vpop.f32.mrf.mxu0
    %v565 = vadd.f32 %v112, %v564
    %v566 = vpop.f32.mrf.mxu0
    %v567 = vadd.f32 %v116, %v566
    %568 = vmatprep.mubr.bf16.mxu0 0
    %569 = vmatmul.mubr.bf16.gmra.mxu0 %v206
    %v570 = vpop.f32.mrf.mxu0
    %v571 = vadd.f32 %v112, %v570
    %v572 = vpop.f32.mrf.mxu0
    %v573 = vadd.f32 %v116, %v572
    %v574 = vpop.f32.mrf.mxu0
    %v575 = vadd.f32 %v112, %v574
    %v576 = vpop.f32.mrf.mxu0
    %v577 = vadd.f32 %v116, %v576
    %578 = vmatprep.mubr.bf16.mxu0 0
    %579 = vmatmul.mubr.bf16.gmra.mxu0 %v209
    %v580 = vpop.f32.mrf.mxu0
    %v581 = vadd.f32 %v112, %v580
    %v582 = vpop.f32.mrf.mxu0
    %v583 = vadd.f32 %v116, %v582
    %v584 = vpop.f32.mrf.mxu0
    %v585 = vadd.f32 %v112, %v584
    %v586 = vpop.f32.mrf.mxu0
    %v587 = vadd.f32 %v116, %v586
    %588 = vmatprep.mubr.bf16.mxu0 0
    %589 = vmatmul.mubr.bf16.gmra.mxu0 %v212
    %v590 = vpop.f32.mrf.mxu0
    %v591 = vadd.f32 %v112, %v590
    %v592 = vpop.f32.mrf.mxu0
    %v593 = vadd.f32 %v116, %v592
    %v594 = vpop.f32.mrf.mxu0
    %v595 = vadd.f32 %v112, %v594
    %v596 = vpop.f32.mrf.mxu0
    %v597 = vadd.f32 %v116, %v596
    %598 = vmatprep.mubr.bf16.mxu0 0
    %599 = vmatmul.mubr.bf16.gmra.mxu0 %v215
    %v600 = vpop.f32.mrf.mxu0
    %v601 = vadd.f32 %v112, %v600
    %v602 = vpop.f32.mrf.mxu0
    %v603 = vadd.f32 %v116, %v602
    %v604 = vpop.f32.mrf.mxu0
    %v605 = vadd.f32 %v112, %v604
    %v606 = vpop.f32.mrf.mxu0
    %v607 = vadd.f32 %v116, %v606
    %608 = vmatprep.mubr.bf16.mxu0 0
    %609 = vmatmul.mubr.bf16.gmra.mxu0 %v218
    %v610 = vpop.f32.mrf.mxu0
    %v611 = vadd.f32 %v112, %v610
    %v612 = vpop.f32.mrf.mxu0
    %v613 = vadd.f32 %v116, %v612
    %v614 = vpop.f32.mrf.mxu0
    %v615 = vadd.f32 %v112, %v614
    %v616 = vpop.f32.mrf.mxu0
    %v617 = vadd.f32 %v116, %v616
    %618 = vdwg.mxu0
    %v619 = vmax.f32 %v268, 0.0
    %v620 = vmax.f32 %v270, 0.0
    %v621 = vmax.f32 %v461, 0.0
    %v622 = vmax.f32 %v463, 0.0
    %v623 = vmax.f32 %v272, 0.0
    %v624 = vmax.f32 %v274, 0.0
    %v625 = vmax.f32 %v465, 0.0
    %v626 = vmax.f32 %v467, 0.0
    %v627 = vmax.f32 %v278, 0.0
    %v628 = vmax.f32 %v280, 0.0
    %v629 = vmax.f32 %v471, 0.0
    %v630 = vmax.f32 %v473, 0.0
    %v631 = vmax.f32 %v282, 0.0
    %v632 = vmax.f32 %v284, 0.0
    %v633 = vmax.f32 %v475, 0.0
    %v634 = vmax.f32 %v477, 0.0
    %v635 = vmax.f32 %v288, 0.0
    %v636 = vmax.f32 %v290, 0.0
    %v637 = vmax.f32 %v481, 0.0
    %v638 = vmax.f32 %v483, 0.0
    %v639 = vmax.f32 %v292, 0.0
    %v640 = vmax.f32 %v294, 0.0
    %v641 = vmax.f32 %v485, 0.0
    %v642 = vmax.f32 %v487, 0.0
    %v643 = vmax.f32 %v298, 0.0
    %v644 = vmax.f32 %v300, 0.0
    %v645 = vmax.f32 %v491, 0.0
    %v646 = vmax.f32 %v493, 0.0
    %v647 = vmax.f32 %v302, 0.0
    %v648 = vmax.f32 %v304, 0.0
    %v649 = vmax.f32 %v495, 0.0
    %v650 = vmax.f32 %v497, 0.0
    %v651 = vmax.f32 %v308, 0.0
    %v652 = vmax.f32 %v310, 0.0
    %v653 = vmax.f32 %v501, 0.0
    %v654 = vmax.f32 %v503, 0.0
    %v655 = vmax.f32 %v312, 0.0
    %v656 = vmax.f32 %v314, 0.0
    %v657 = vmax.f32 %v505, 0.0
    %v658 = vmax.f32 %v507, 0.0
    %v659 = vmax.f32 %v318, 0.0
    %v660 = vmax.f32 %v320, 0.0
    %v661 = vmax.f32 %v511, 0.0
    %v662 = vmax.f32 %v513, 0.0
    %v663 = vmax.f32 %v322, 0.0
    %v664 = vmax.f32 %v324, 0.0
    %v665 = vmax.f32 %v515, 0.0
    %v666 = vmax.f32 %v517, 0.0
    %v667 = vmax.f32 %v328, 0.0
    %v668 = vmax.f32 %v330, 0.0
    %v669 = vmax.f32 %v521, 0.0
    %v670 = vmax.f32 %v523, 0.0
    %v671 = vmax.f32 %v332, 0.0
    %v672 = vmax.f32 %v334, 0.0
    %v673 = vmax.f32 %v525, 0.0
    %v674 = vmax.f32 %v527, 0.0
    %v675 = vmax.f32 %v338, 0.0
    %v676 = vmax.f32 %v340, 0.0
    %v677 = vmax.f32 %v531, 0.0
    %v678 = vmax.f32 %v533, 0.0
    %v679 = vmax.f32 %v342, 0.0
    %v680 = vmax.f32 %v344, 0.0
    %v681 = vmax.f32 %v535, 0.0
    %v682 = vmax.f32 %v537, 0.0
    %v683 = vmax.f32 %v348, 0.0
    %v684 = vmax.f32 %v350, 0.0
    %v685 = vmax.f32 %v541, 0.0
    %v686 = vmax.f32 %v543, 0.0
    %v687 = vmax.f32 %v352, 0.0
    %v688 = vmax.f32 %v354, 0.0
    %v689 = vmax.f32 %v545, 0.0
    %v690 = vmax.f32 %v547, 0.0
    %v691 = vmax.f32 %v358, 0.0
    %v692 = vmax.f32 %v360, 0.0
    %v693 = vmax.f32 %v551, 0.0
    %v694 = vmax.f32 %v553, 0.0
    %v695 = vmax.f32 %v362, 0.0
    %v696 = vmax.f32 %v364, 0.0
    %v697 = vmax.f32 %v555, 0.0
    %v698 = vmax.f32 %v557, 0.0
    %v699 = vmax.f32 %v368, 0.0
    %v700 = vmax.f32 %v370, 0.0
    %v701 = vmax.f32 %v561, 0.0
    %v702 = vmax.f32 %v563, 0.0
    %v703 = vmax.f32 %v372, 0.0
    %v704 = vmax.f32 %v374, 0.0
    %v705 = vmax.f32 %v565, 0.0
    %v706 = vmax.f32 %v567, 0.0
    %v707 = vmax.f32 %v378, 0.0
    %v708 = vmax.f32 %v380, 0.0
    %v709 = vmax.f32 %v571, 0.0
    %v710 = vmax.f32 %v573, 0.0
    %v711 = vmax.f32 %v382, 0.0
    %v712 = vmax.f32 %v384, 0.0
    %v713 = vmax.f32 %v575, 0.0
    %v714 = vmax.f32 %v577, 0.0
    %v715 = vmax.f32 %v388, 0.0
    %v716 = vmax.f32 %v390, 0.0
    %v717 = vmax.f32 %v581, 0.0
    %v718 = vmax.f32 %v583, 0.0
    %v719 = vmax.f32 %v392, 0.0
    %v720 = vmax.f32 %v394, 0.0
    %v721 = vmax.f32 %v585, 0.0
    %v722 = vmax.f32 %v587, 0.0
    %v723 = vmax.f32 %v398, 0.0
    %v724 = vmax.f32 %v400, 0.0
    %v725 = vmax.f32 %v591, 0.0
    %v726 = vmax.f32 %v593, 0.0
    %v727 = vmax.f32 %v402, 0.0
    %v728 = vmax.f32 %v404, 0.0
    %v729 = vmax.f32 %v595, 0.0
    %v730 = vmax.f32 %v597, 0.0
    %v731 = vmax.f32 %v408, 0.0
    %v732 = vmax.f32 %v410, 0.0
    %v733 = vmax.f32 %v601, 0.0
    %v734 = vmax.f32 %v603, 0.0
    %v735 = vmax.f32 %v412, 0.0
    %v736 = vmax.f32 %v414, 0.0
    %v737 = vmax.f32 %v605, 0.0
    %v738 = vmax.f32 %v607, 0.0
    %v739 = vmax.f32 %v418, 0.0
    %v740 = vmax.f32 %v420, 0.0
    %v741 = vmax.f32 %v611, 0.0
    %v742 = vmax.f32 %v613, 0.0
    %v743 = vmax.f32 %v422, 0.0
    %v744 = vmax.f32 %v424, 0.0
    %v745 = vmax.f32 %v615, 0.0
    %v746 = vmax.f32 %v617, 0.0
    %v747 = vpack.c.bf16 %v623, %v619
    %v748 = vpack.c.bf16 %v624, %v620
    %v749 = vpack.c.bf16 %v625, %v621
    %v750 = vpack.c.bf16 %v626, %v622
    %v751 = vpack.c.bf16 %v631, %v627
    %v752 = vpack.c.bf16 %v632, %v628
    %v753 = vpack.c.bf16 %v633, %v629
    %v754 = vpack.c.bf16 %v634, %v630
    %v755 = vpack.c.bf16 %v639, %v635
    %v756 = vpack.c.bf16 %v640, %v636
    %v757 = vpack.c.bf16 %v641, %v637
    %v758 = vpack.c.bf16 %v642, %v638
    %v759 = vpack.c.bf16 %v647, %v643
    %v760 = vpack.c.bf16 %v648, %v644
    %v761 = vpack.c.bf16 %v649, %v645
    %v762 = vpack.c.bf16 %v650, %v646
    %v763 = vpack.c.bf16 %v655, %v651
    %v764 = vpack.c.bf16 %v656, %v652
    %v765 = vpack.c.bf16 %v657, %v653
    %v766 = vpack.c.bf16 %v658, %v654
    %v767 = vpack.c.bf16 %v663, %v659
    %v768 = vpack.c.bf16 %v664, %v660
    %v769 = vpack.c.bf16 %v665, %v661
    %v770 = vpack.c.bf16 %v666, %v662
    %v771 = vpack.c.bf16 %v671, %v667
    %v772 = vpack.c.bf16 %v672, %v668
    %v773 = vpack.c.bf16 %v673, %v669
    %v774 = vpack.c.bf16 %v674, %v670
    %v775 = vpack.c.bf16 %v679, %v675
    %v776 = vpack.c.bf16 %v680, %v676
    %v777 = vpack.c.bf16 %v681, %v677
    %v778 = vpack.c.bf16 %v682, %v678
    %v779 = vpack.c.bf16 %v687, %v683
    %v780 = vpack.c.bf16 %v688, %v684
    %v781 = vpack.c.bf16 %v689, %v685
    %v782 = vpack.c.bf16 %v690, %v686
    %v783 = vpack.c.bf16 %v695, %v691
    %v784 = vpack.c.bf16 %v696, %v692
    %v785 = vpack.c.bf16 %v697, %v693
    %v786 = vpack.c.bf16 %v698, %v694
    %v787 = vpack.c.bf16 %v703, %v699
    %v788 = vpack.c.bf16 %v704, %v700
    %v789 = vpack.c.bf16 %v705, %v701
    %v790 = vpack.c.bf16 %v706, %v702
    %v791 = vpack.c.bf16 %v711, %v707
    %v792 = vpack.c.bf16 %v712, %v708
    %v793 = vpack.c.bf16 %v713, %v709
    %v794 = vpack.c.bf16 %v714, %v710
    %v795 = vpack.c.bf16 %v719, %v715
    %v796 = vpack.c.bf16 %v720, %v716
    %v797 = vpack.c.bf16 %v721, %v717
    %v798 = vpack.c.bf16 %v722, %v718
    %v799 = vpack.c.bf16 %v727, %v723
    %v800 = vpack.c.bf16 %v728, %v724
    %v801 = vpack.c.bf16 %v729, %v725
    %v802 = vpack.c.bf16 %v730, %v726
    %v803 = vpack.c.bf16 %v735, %v731
    %v804 = vpack.c.bf16 %v736, %v732
    %v805 = vpack.c.bf16 %v737, %v733
    %v806 = vpack.c.bf16 %v738, %v734
    %v807 = vpack.c.bf16 %v743, %v739
    %v808 = vpack.c.bf16 %v744, %v740
    %v809 = vpack.c.bf16 %v745, %v741
    %v810 = vpack.c.bf16 %v746, %v742
    %v811 = vld [vmem:[#allocation2] sm:$0xff]
    %v812 = vld [vmem:[#allocation2 + $0x8] sm:$0xf]
    %v813 = vld [vmem:[#allocation2 + $0xc] sm:$0xff]
    %v814 = vld [vmem:[#allocation2 + $0x14] sm:$0xf]
    %v815 = vld [vmem:[#allocation2 + $0x18] sm:$0xff]
    %v816 = vld [vmem:[#allocation2 + $0x20] sm:$0xf]
    %v817 = vld [vmem:[#allocation2 + $0x24] sm:$0xff]
    %v818 = vld [vmem:[#allocation2 + $0x2c] sm:$0xf]
    %v819 = vld [vmem:[#allocation2 + $0x30] sm:$0xff]
    %v820 = vld [vmem:[#allocation2 + $0x38] sm:$0xf]
    %v821 = vld [vmem:[#allocation2 + $0x3c] sm:$0xff]
    %v822 = vld [vmem:[#allocation2 + $0x44] sm:$0xf]
    %v823 = vld [vmem:[#allocation2 + $0x48] sm:$0xff]
    %v824 = vld [vmem:[#allocation2 + $0x50] sm:$0xf]
    %v825 = vld [vmem:[#allocation2 + $0x54] sm:$0xff]
    %v826 = vld [vmem:[#allocation2 + $0x5c] sm:$0xf]
    %v827 = vld [vmem:[#allocation2 + $0x60] sm:$0xff]
    %v828 = vld [vmem:[#allocation2 + $0x68] sm:$0xf]
    %v829 = vld [vmem:[#allocation2 + $0x6c] sm:$0xff]
    %v830 = vld [vmem:[#allocation2 + $0x74] sm:$0xf]
    %v831 = vld [vmem:[#allocation2 + $0x78] sm:$0xff]
    %v832 = vld [vmem:[#allocation2 + $0x80] sm:$0xf]
    %v833 = vld [vmem:[#allocation2 + $0x84] sm:$0xff]
    %v834 = vld [vmem:[#allocation2 + $0x8c] sm:$0xf]
    %v835 = vld [vmem:[#allocation2 + $0x90] sm:$0xff]
    %v836 = vld [vmem:[#allocation2 + $0x98] sm:$0xf]
    %v837 = vld [vmem:[#allocation2 + $0x9c] sm:$0xff]
    %v838 = vld [vmem:[#allocation2 + $0xa4] sm:$0xf]
    %v839 = vld [vmem:[#allocation2 + $0xa8] sm:$0xff]
    %v840 = vld [vmem:[#allocation2 + $0xb0] sm:$0xf]
    %v841 = vld [vmem:[#allocation2 + $0xb4] sm:$0xff]
    %v842 = vld [vmem:[#allocation2 + $0xbc] sm:$0xf]
    %v843 = vld [vmem:[#allocation2 + $0xc0] sm:$0xff]
    %v844 = vld [vmem:[#allocation2 + $0xc8] sm:$0xf]
    %v845 = vld [vmem:[#allocation2 + $0xcc] sm:$0xff]
    %v846 = vld [vmem:[#allocation2 + $0xd4] sm:$0xf]
    %v847 = vld [vmem:[#allocation2 + $0xd8] sm:$0xff]
    %v848 = vld [vmem:[#allocation2 + $0xe0] sm:$0xf]
    %v849 = vld [vmem:[#allocation2 + $0xe4] sm:$0xff]
    %v850 = vld [vmem:[#allocation2 + $0xec] sm:$0xf]
    %v851 = vld [vmem:[#allocation2 + $0xf0] sm:$0xff]
    %v852 = vld [vmem:[#allocation2 + $0xf8] sm:$0xf]
    %v853 = vld [vmem:[#allocation2 + $0xfc] sm:$0xff]
    %v854 = vld [vmem:[#allocation2 + $0x104] sm:$0xf]
    %v855 = vld [vmem:[#allocation2 + $0x108] sm:$0xff]
    %v856 = vld [vmem:[#allocation2 + $0x110] sm:$0xf]
    %v857 = vld [vmem:[#allocation2 + $0x114] sm:$0xff]
    %v858 = vld [vmem:[#allocation2 + $0x11c] sm:$0xf]
    %v859 = vld [vmem:[#allocation2 + $0x120] sm:$0xff]
    %v860 = vld [vmem:[#allocation2 + $0x128] sm:$0xf]
    %v861 = vld [vmem:[#allocation2 + $0x12c] sm:$0xff]
    %v862 = vld [vmem:[#allocation2 + $0x134] sm:$0xf]
    %v863 = vld [vmem:[#allocation2 + $0x138] sm:$0xff]
    %v864 = vld [vmem:[#allocation2 + $0x140] sm:$0xf]
    %v865 = vld [vmem:[#allocation2 + $0x144] sm:$0xff]
    %v866 = vld [vmem:[#allocation2 + $0x14c] sm:$0xf]
    %v867 = vld [vmem:[#allocation2 + $0x150] sm:$0xff]
    %v868 = vld [vmem:[#allocation2 + $0x158] sm:$0xf]
    %v869 = vld [vmem:[#allocation2 + $0x15c] sm:$0xff]
    %v870 = vld [vmem:[#allocation2 + $0x164] sm:$0xf]
    %v871 = vld [vmem:[#allocation2 + $0x168] sm:$0xff]
    %v872 = vld [vmem:[#allocation2 + $0x170] sm:$0xf]
    %v873 = vld [vmem:[#allocation2 + $0x174] sm:$0xff]
    %v874 = vld [vmem:[#allocation2 + $0x17c] sm:$0xf]
    %v875 = vld [vmem:[#allocation2 + $0x180] sm:$0xff]
    %v876 = vld [vmem:[#allocation2 + $0x188] sm:$0xf]
    %v877 = vld [vmem:[#allocation2 + $0x18c] sm:$0xff]
    %v878 = vld [vmem:[#allocation2 + $0x194] sm:$0xf]
    %v879 = vld [vmem:[#allocation2 + $0x198] sm:$0xff]
    %v880 = vld [vmem:[#allocation2 + $0x1a0] sm:$0xf]
    %v881 = vld [vmem:[#allocation2 + $0x1a4] sm:$0xff]
    %v882 = vld [vmem:[#allocation2 + $0x1ac] sm:$0xf]
    %v883 = vld [vmem:[#allocation2 + $0x1b0] sm:$0xff]
    %v884 = vld [vmem:[#allocation2 + $0x1b8] sm:$0xf]
    %v885 = vld [vmem:[#allocation2 + $0x1bc] sm:$0xff]
    %v886 = vld [vmem:[#allocation2 + $0x1c4] sm:$0xf]
    %v887 = vld [vmem:[#allocation2 + $0x1c8] sm:$0xff]
    %v888 = vld [vmem:[#allocation2 + $0x1d0] sm:$0xf]
    %v889 = vld [vmem:[#allocation2 + $0x1d4] sm:$0xff]
    %v890 = vld [vmem:[#allocation2 + $0x1dc] sm:$0xf]
    %v891 = vld [vmem:[#allocation2 + $0x1e0] sm:$0xff]
    %v892 = vld [vmem:[#allocation2 + $0x1e8] sm:$0xf]
    %v893 = vld [vmem:[#allocation2 + $0x1ec] sm:$0xff]
    %v894 = vld [vmem:[#allocation2 + $0x1f4] sm:$0xf]
    %v895 = vld [vmem:[#allocation2 + $0x1f8] sm:$0xff]
    %v896 = vld [vmem:[#allocation2 + $0x200] sm:$0xf]
    %v897 = vld [vmem:[#allocation2 + $0x204] sm:$0xff]
    %v898 = vld [vmem:[#allocation2 + $0x20c] sm:$0xf]
    %v899 = vld [vmem:[#allocation2 + $0x210] sm:$0xff]
    %v900 = vld [vmem:[#allocation2 + $0x218] sm:$0xf]
    %v901 = vld [vmem:[#allocation2 + $0x21c] sm:$0xff]
    %v902 = vld [vmem:[#allocation2 + $0x224] sm:$0xf]
    %v903 = vld [vmem:[#allocation2 + $0x228] sm:$0xff]
    %v904 = vld [vmem:[#allocation2 + $0x230] sm:$0xf]
    %v905 = vld [vmem:[#allocation2 + $0x234] sm:$0xff]
    %v906 = vld [vmem:[#allocation2 + $0x23c] sm:$0xf]
    %v907 = vld [vmem:[#allocation2 + $0x240] sm:$0xff]
    %v908 = vld [vmem:[#allocation2 + $0x248] sm:$0xf]
    %v909 = vld [vmem:[#allocation2 + $0x24c] sm:$0xff]
    %v910 = vld [vmem:[#allocation2 + $0x254] sm:$0xf]
    %v911 = vld [vmem:[#allocation2 + $0x258] sm:$0xff]
    %v912 = vld [vmem:[#allocation2 + $0x260] sm:$0xf]
    %v913 = vld [vmem:[#allocation2 + $0x264] sm:$0xff]
    %v914 = vld [vmem:[#allocation2 + $0x26c] sm:$0xf]
    %v915 = vld [vmem:[#allocation2 + $0x270] sm:$0xff]
    %v916 = vld [vmem:[#allocation2 + $0x278] sm:$0xf]
    %v917 = vld [vmem:[#allocation2 + $0x27c] sm:$0xff]
    %v918 = vld [vmem:[#allocation2 + $0x284] sm:$0xf]
    %v919 = vld [vmem:[#allocation2 + $0x288] sm:$0xff]
    %v920 = vld [vmem:[#allocation2 + $0x290] sm:$0xf]
    %v921 = vld [vmem:[#allocation2 + $0x294] sm:$0xff]
    %v922 = vld [vmem:[#allocation2 + $0x29c] sm:$0xf]
    %v923 = vld [vmem:[#allocation2 + $0x2a0] sm:$0xff]
    %v924 = vld [vmem:[#allocation2 + $0x2a8] sm:$0xf]
    %v925 = vld [vmem:[#allocation2 + $0x2ac] sm:$0xff]
    %v926 = vld [vmem:[#allocation2 + $0x2b4] sm:$0xf]
    %v927 = vld [vmem:[#allocation2 + $0x2b8] sm:$0xff]
    %v928 = vld [vmem:[#allocation2 + $0x2c0] sm:$0xf]
    %v929 = vld [vmem:[#allocation2 + $0x2c4] sm:$0xff]
    %v930 = vld [vmem:[#allocation2 + $0x2cc] sm:$0xf]
    %v931 = vld [vmem:[#allocation2 + $0x2d0] sm:$0xff]
    %v932 = vld [vmem:[#allocation2 + $0x2d8] sm:$0xf]
    %v933 = vld [vmem:[#allocation2 + $0x2dc] sm:$0xff]
    %v934 = vld [vmem:[#allocation2 + $0x2e4] sm:$0xf]
    %v935 = vld [vmem:[#allocation2 + $0x2e8] sm:$0xff]
    %v936 = vld [vmem:[#allocation2 + $0x2f0] sm:$0xf]
    %v937 = vld [vmem:[#allocation2 + $0x2f4] sm:$0xff]
    %v938 = vld [vmem:[#allocation2 + $0x2fc] sm:$0xf]
    %v939 = vld [vmem:[%s4] sm:$0x7]
    %v941 = vlaneseq
    %v942 = vshrl.u32 %v941, 7
    %v943 = vsub.s32 0, %v942
    %v944 = vrot.slane %v939, %v943
    %v945 = vlaneseq
    %v946 = vshrl.u32 %v945, 7
    %v947 = vsub.s32 1, %v946
    %v948 = vrot.slane %v939, %v947
    %v949 = vlaneseq
    %v950 = vshrl.u32 %v949, 7
    %v951 = vsub.s32 2, %v950
    %v952 = vrot.slane %v939, %v951
    %v1084 = vunpack.c.l.b16 %v811
    %v1085 = vunpack.c.h.b16 %v811
    %v1086 = vunpack.c.l.b16 %v812
    %v1087 = vunpack.c.l.b16 %v813
    %v1088 = vunpack.c.h.b16 %v813
    %v1089 = vunpack.c.l.b16 %v814
    %v1090 = vunpack.c.l.b16 %v815
    %v1091 = vunpack.c.h.b16 %v815
    %v1092 = vunpack.c.l.b16 %v816
    %v1093 = vunpack.c.l.b16 %v817
    %v1094 = vunpack.c.h.b16 %v817
    %v1095 = vunpack.c.l.b16 %v818
    %v1096 = vunpack.c.l.b16 %v819
    %v1097 = vunpack.c.h.b16 %v819
    %v1098 = vunpack.c.l.b16 %v820
    %v1099 = vunpack.c.l.b16 %v821
    %v1100 = vunpack.c.h.b16 %v821
    %v1101 = vunpack.c.l.b16 %v822
    %v1102 = vunpack.c.l.b16 %v823
    %v1103 = vunpack.c.h.b16 %v823
    %v1104 = vunpack.c.l.b16 %v824
    %v1105 = vunpack.c.l.b16 %v825
    %v1106 = vunpack.c.h.b16 %v825
    %v1107 = vunpack.c.l.b16 %v826
    %v1108 = vunpack.c.l.b16 %v827
    %v1109 = vunpack.c.h.b16 %v827
    %v1110 = vunpack.c.l.b16 %v828
    %v1111 = vunpack.c.l.b16 %v829
    %v1112 = vunpack.c.h.b16 %v829
    %v1113 = vunpack.c.l.b16 %v830
    %v1114 = vunpack.c.l.b16 %v831
    %v1115 = vunpack.c.h.b16 %v831
    %v1116 = vunpack.c.l.b16 %v832
    %v1117 = vunpack.c.l.b16 %v833
    %v1118 = vunpack.c.h.b16 %v833
    %v1119 = vunpack.c.l.b16 %v834
    %v1120 = vunpack.c.l.b16 %v835
    %v1121 = vunpack.c.h.b16 %v835
    %v1122 = vunpack.c.l.b16 %v836
    %v1123 = vunpack.c.l.b16 %v837
    %v1124 = vunpack.c.h.b16 %v837
    %v1125 = vunpack.c.l.b16 %v838
    %v1126 = vunpack.c.l.b16 %v839
    %v1127 = vunpack.c.h.b16 %v839
    %v1128 = vunpack.c.l.b16 %v840
    %v1129 = vunpack.c.l.b16 %v841
    %v1130 = vunpack.c.h.b16 %v841
    %v1131 = vunpack.c.l.b16 %v842
    %v1132 = vunpack.c.l.b16 %v843
    %v1133 = vunpack.c.h.b16 %v843
    %v1134 = vunpack.c.l.b16 %v844
    %v1135 = vunpack.c.l.b16 %v845
    %v1136 = vunpack.c.h.b16 %v845
    %v1137 = vunpack.c.l.b16 %v846
    %v1138 = vunpack.c.l.b16 %v847
    %v1139 = vunpack.c.h.b16 %v847
    %v1140 = vunpack.c.l.b16 %v848
    %v1141 = vunpack.c.l.b16 %v849
    %v1142 = vunpack.c.h.b16 %v849
    %v1143 = vunpack.c.l.b16 %v850
    %v1144 = vunpack.c.l.b16 %v851
    %v1145 = vunpack.c.h.b16 %v851
    %v1146 = vunpack.c.l.b16 %v852
    %v1147 = vunpack.c.l.b16 %v853
    %v1148 = vunpack.c.h.b16 %v853
    %v1149 = vunpack.c.l.b16 %v854
    %v1150 = vunpack.c.l.b16 %v855
    %v1151 = vunpack.c.h.b16 %v855
    %v1152 = vunpack.c.l.b16 %v856
    %v1153 = vunpack.c.l.b16 %v857
    %v1154 = vunpack.c.h.b16 %v857
    %v1155 = vunpack.c.l.b16 %v858
    %v1156 = vunpack.c.l.b16 %v859
    %v1157 = vunpack.c.h.b16 %v859
    %v1158 = vunpack.c.l.b16 %v860
    %v1159 = vunpack.c.l.b16 %v861
    %v1160 = vunpack.c.h.b16 %v861
    %v1161 = vunpack.c.l.b16 %v862
    %v1162 = vunpack.c.l.b16 %v863
    %v1163 = vunpack.c.h.b16 %v863
    %v1164 = vunpack.c.l.b16 %v864
    %v1165 = vunpack.c.l.b16 %v865
    %v1166 = vunpack.c.h.b16 %v865
    %v1167 = vunpack.c.l.b16 %v866
    %v1168 = vunpack.c.l.b16 %v867
    %v1169 = vunpack.c.h.b16 %v867
    %v1170 = vunpack.c.l.b16 %v868
    %v1171 = vunpack.c.l.b16 %v869
    %v1172 = vunpack.c.h.b16 %v869
    %v1173 = vunpack.c.l.b16 %v870
    %v1174 = vunpack.c.l.b16 %v871
    %v1175 = vunpack.c.h.b16 %v871
    %v1176 = vunpack.c.l.b16 %v872
    %v1177 = vunpack.c.l.b16 %v873
    %v1178 = vunpack.c.h.b16 %v873
    %v1179 = vunpack.c.l.b16 %v874
    %v1180 = vunpack.c.l.b16 %v875
    %v1181 = vunpack.c.h.b16 %v875
    %v1182 = vunpack.c.l.b16 %v876
    %v1183 = vunpack.c.l.b16 %v877
    %v1184 = vunpack.c.h.b16 %v877
    %v1185 = vunpack.c.l.b16 %v878
    %v1186 = vunpack.c.l.b16 %v879
    %v1187 = vunpack.c.h.b16 %v879
    %v1188 = vunpack.c.l.b16 %v880
    %v1189 = vunpack.c.l.b16 %v881
    %v1190 = vunpack.c.h.b16 %v881
    %v1191 = vunpack.c.l.b16 %v882
    %v1192 = vunpack.c.l.b16 %v883
    %v1193 = vunpack.c.h.b16 %v883
    %v1194 = vunpack.c.l.b16 %v884
    %v1195 = vunpack.c.l.b16 %v885
    %v1196 = vunpack.c.h.b16 %v885
    %v1197 = vunpack.c.l.b16 %v886
    %v1198 = vunpack.c.l.b16 %v887
    %v1199 = vunpack.c.h.b16 %v887
    %v1200 = vunpack.c.l.b16 %v888
    %v1201 = vunpack.c.l.b16 %v889
    %v1202 = vunpack.c.h.b16 %v889
    %v1203 = vunpack.c.l.b16 %v890
    %v1204 = vunpack.c.l.b16 %v891
    %v1205 = vunpack.c.h.b16 %v891
    %v1206 = vunpack.c.l.b16 %v892
    %v1207 = vunpack.c.l.b16 %v893
    %v1208 = vunpack.c.h.b16 %v893
    %v1209 = vunpack.c.l.b16 %v894
    %v1210 = vunpack.c.l.b16 %v895
    %v1211 = vunpack.c.h.b16 %v895
    %v1212 = vunpack.c.l.b16 %v896
    %v1213 = vunpack.c.l.b16 %v897
    %v1214 = vunpack.c.h.b16 %v897
    %v1215 = vunpack.c.l.b16 %v898
    %v1216 = vunpack.c.l.b16 %v899
    %v1217 = vunpack.c.h.b16 %v899
    %v1218 = vunpack.c.l.b16 %v900
    %v1219 = vunpack.c.l.b16 %v901
    %v1220 = vunpack.c.h.b16 %v901
    %v1221 = vunpack.c.l.b16 %v902
    %v1222 = vunpack.c.l.b16 %v903
    %v1223 = vunpack.c.h.b16 %v903
    %v1224 = vunpack.c.l.b16 %v904
    %v1225 = vunpack.c.l.b16 %v905
    %v1226 = vunpack.c.h.b16 %v905
    %v1227 = vunpack.c.l.b16 %v906
    %v1228 = vunpack.c.l.b16 %v907
    %v1229 = vunpack.c.h.b16 %v907
    %v1230 = vunpack.c.l.b16 %v908
    %v1231 = vunpack.c.l.b16 %v909
    %v1232 = vunpack.c.h.b16 %v909
    %v1233 = vunpack.c.l.b16 %v910
    %v1234 = vunpack.c.l.b16 %v911
    %v1235 = vunpack.c.h.b16 %v911
    %v1236 = vunpack.c.l.b16 %v912
    %v1237 = vunpack.c.l.b16 %v913
    %v1238 = vunpack.c.h.b16 %v913
    %v1239 = vunpack.c.l.b16 %v914
    %v1240 = vunpack.c.l.b16 %v915
    %v1241 = vunpack.c.h.b16 %v915
    %v1242 = vunpack.c.l.b16 %v916
    %v1243 = vunpack.c.l.b16 %v917
    %v1244 = vunpack.c.h.b16 %v917
    %v1245 = vunpack.c.l.b16 %v918
    %v1246 = vunpack.c.l.b16 %v919
    %v1247 = vunpack.c.h.b16 %v919
    %v1248 = vunpack.c.l.b16 %v920
    %v1249 = vunpack.c.l.b16 %v921
    %v1250 = vunpack.c.h.b16 %v921
    %v1251 = vunpack.c.l.b16 %v922
    %v1252 = vunpack.c.l.b16 %v923
    %v1253 = vunpack.c.h.b16 %v923
    %v1254 = vunpack.c.l.b16 %v924
    %v1255 = vunpack.c.l.b16 %v925
    %v1256 = vunpack.c.h.b16 %v925
    %v1257 = vunpack.c.l.b16 %v926
    %v1258 = vunpack.c.l.b16 %v927
    %v1259 = vunpack.c.h.b16 %v927
    %v1260 = vunpack.c.l.b16 %v928
    %v1261 = vunpack.c.l.b16 %v929
    %v1262 = vunpack.c.h.b16 %v929
    %v1263 = vunpack.c.l.b16 %v930
    %v1264 = vunpack.c.l.b16 %v931
    %v1265 = vunpack.c.h.b16 %v931
    %v1266 = vunpack.c.l.b16 %v932
    %v1267 = vunpack.c.l.b16 %v933
    %v1268 = vunpack.c.h.b16 %v933
    %v1269 = vunpack.c.l.b16 %v934
    %v1270 = vunpack.c.l.b16 %v935
    %v1271 = vunpack.c.h.b16 %v935
    %v1272 = vunpack.c.l.b16 %v936
    %v1273 = vunpack.c.l.b16 %v937
    %v1274 = vunpack.c.h.b16 %v937
    %v1275 = vunpack.c.l.b16 %v938
    %v1276 = vpack.c.b16 %v1087, %v1084
    %v1277 = vpack.c.b16 %v1088, %v1085
    %v1278 = vpack.c.b16 %v1089, %v1086
    %v1279 = vpack.c.b16 %v1093, %v1090
    %v1280 = vpack.c.b16 %v1094, %v1091
    %v1281 = vpack.c.b16 %v1095, %v1092
    %v1282 = vpack.c.b16 %v1099, %v1096
    %v1283 = vpack.c.b16 %v1100, %v1097
    %v1284 = vpack.c.b16 %v1101, %v1098
    %v1285 = vpack.c.b16 %v1105, %v1102
    %v1286 = vpack.c.b16 %v1106, %v1103
    %v1287 = vpack.c.b16 %v1107, %v1104
    %v1288 = vpack.c.b16 %v1111, %v1108
    %v1289 = vpack.c.b16 %v1112, %v1109
    %v1290 = vpack.c.b16 %v1113, %v1110
    %v1291 = vpack.c.b16 %v1117, %v1114
    %v1292 = vpack.c.b16 %v1118, %v1115
    %v1293 = vpack.c.b16 %v1119, %v1116
    %v1294 = vpack.c.b16 %v1123, %v1120
    %v1295 = vpack.c.b16 %v1124, %v1121
    %v1296 = vpack.c.b16 %v1125, %v1122
    %v1297 = vpack.c.b16 %v1129, %v1126
    %v1298 = vpack.c.b16 %v1130, %v1127
    %v1299 = vpack.c.b16 %v1131, %v1128
    %v1300 = vpack.c.b16 %v1135, %v1132
    %v1301 = vpack.c.b16 %v1136, %v1133
    %v1302 = vpack.c.b16 %v1137, %v1134
    %v1303 = vpack.c.b16 %v1141, %v1138
    %v1304 = vpack.c.b16 %v1142, %v1139
    %v1305 = vpack.c.b16 %v1143, %v1140
    %v1306 = vpack.c.b16 %v1147, %v1144
    %v1307 = vpack.c.b16 %v1148, %v1145
    %v1308 = vpack.c.b16 %v1149, %v1146
    %v1309 = vpack.c.b16 %v1153, %v1150
    %v1310 = vpack.c.b16 %v1154, %v1151
    %v1311 = vpack.c.b16 %v1155, %v1152
    %v1312 = vpack.c.b16 %v1159, %v1156
    %v1313 = vpack.c.b16 %v1160, %v1157
    %v1314 = vpack.c.b16 %v1161, %v1158
    %v1315 = vpack.c.b16 %v1165, %v1162
    %v1316 = vpack.c.b16 %v1166, %v1163
    %v1317 = vpack.c.b16 %v1167, %v1164
    %v1318 = vpack.c.b16 %v1171, %v1168
    %v1319 = vpack.c.b16 %v1172, %v1169
    %v1320 = vpack.c.b16 %v1173, %v1170
    %v1321 = vpack.c.b16 %v1177, %v1174
    %v1322 = vpack.c.b16 %v1178, %v1175
    %v1323 = vpack.c.b16 %v1179, %v1176
    %v1324 = vpack.c.b16 %v1183, %v1180
    %v1325 = vpack.c.b16 %v1184, %v1181
    %v1326 = vpack.c.b16 %v1185, %v1182
    %v1327 = vpack.c.b16 %v1189, %v1186
    %v1328 = vpack.c.b16 %v1190, %v1187
    %v1329 = vpack.c.b16 %v1191, %v1188
    %v1330 = vpack.c.b16 %v1195, %v1192
    %v1331 = vpack.c.b16 %v1196, %v1193
    %v1332 = vpack.c.b16 %v1197, %v1194
    %v1333 = vpack.c.b16 %v1201, %v1198
    %v1334 = vpack.c.b16 %v1202, %v1199
    %v1335 = vpack.c.b16 %v1203, %v1200
    %v1336 = vpack.c.b16 %v1207, %v1204
    %v1337 = vpack.c.b16 %v1208, %v1205
    %v1338 = vpack.c.b16 %v1209, %v1206
    %v1339 = vpack.c.b16 %v1213, %v1210
    %v1340 = vpack.c.b16 %v1214, %v1211
    %v1341 = vpack.c.b16 %v1215, %v1212
    %v1342 = vpack.c.b16 %v1219, %v1216
    %v1343 = vpack.c.b16 %v1220, %v1217
    %v1344 = vpack.c.b16 %v1221, %v1218
    %v1345 = vpack.c.b16 %v1225, %v1222
    %v1346 = vpack.c.b16 %v1226, %v1223
    %v1347 = vpack.c.b16 %v1227, %v1224
    %v1348 = vpack.c.b16 %v1231, %v1228
    %v1349 = vpack.c.b16 %v1232, %v1229
    %v1350 = vpack.c.b16 %v1233, %v1230
    %v1351 = vpack.c.b16 %v1237, %v1234
    %v1352 = vpack.c.b16 %v1238, %v1235
    %v1353 = vpack.c.b16 %v1239, %v1236
    %v1354 = vpack.c.b16 %v1243, %v1240
    %v1355 = vpack.c.b16 %v1244, %v1241
    %v1356 = vpack.c.b16 %v1245, %v1242
    %v1357 = vpack.c.b16 %v1249, %v1246
    %v1358 = vpack.c.b16 %v1250, %v1247
    %v1359 = vpack.c.b16 %v1251, %v1248
    %v1360 = vpack.c.b16 %v1255, %v1252
    %v1361 = vpack.c.b16 %v1256, %v1253
    %v1362 = vpack.c.b16 %v1257, %v1254
    %v1363 = vpack.c.b16 %v1261, %v1258
    %v1364 = vpack.c.b16 %v1262, %v1259
    %v1365 = vpack.c.b16 %v1263, %v1260
    %v1366 = vpack.c.b16 %v1267, %v1264
    %v1367 = vpack.c.b16 %v1268, %v1265
    %v1368 = vpack.c.b16 %v1269, %v1266
    %v1369 = vpack.c.b16 %v1273, %v1270
    %v1370 = vpack.c.b16 %v1274, %v1271
    %v1371 = vpack.c.b16 %v1275, %v1272
    %1468 = vmatprep.subr.bf16.mxu0 %v1298
    %1469 = vmatpush1.bf16.msra.mxu0 %v1297
    %1470 = vmatprep.subr.bf16.mxu0 %v1295
    %1471 = vmatpush1.bf16.msra.mxu0 %v1294
    %1472 = vmatprep.subr.bf16.mxu0 %v1292
    %1473 = vmatpush1.bf16.msra.mxu0 %v1291
    %1474 = vmatprep.subr.bf16.mxu0 %v1289
    %1475 = vmatpush1.bf16.msra.mxu0 %v1288
    %1476 = vmatprep.subr.bf16.mxu0 %v1286
    %1477 = vmatpush1.bf16.msra.mxu0 %v1285
    %1478 = vmatprep.subr.bf16.mxu0 %v1283
    %1479 = vmatpush1.bf16.msra.mxu0 %v1282
    %1480 = vmatprep.subr.bf16.mxu0 %v1280
    %1481 = vmatpush1.bf16.msra.mxu0 %v1279
    %1482 = vmatprep.subr.bf16.mxu0 %v1277
    %1483 = vmatpush1.bf16.msra.mxu0 %v1276
    %1484 = vmatprep.subr.bf16.mxu0 %v1322
    %1485 = vmatpush2.bf16.msra.mxu0 %v1321
    %1486 = vmatprep.subr.bf16.mxu0 %v1319
    %1487 = vmatpush2.bf16.msra.mxu0 %v1318
    %1488 = vmatprep.subr.bf16.mxu0 %v1316
    %1489 = vmatpush2.bf16.msra.mxu0 %v1315
    %1490 = vmatprep.subr.bf16.mxu0 %v1313
    %1491 = vmatpush2.bf16.msra.mxu0 %v1312
    %1492 = vmatprep.subr.bf16.mxu0 %v1310
    %1493 = vmatpush2.bf16.msra.mxu0 %v1309
    %1494 = vmatprep.subr.bf16.mxu0 %v1307
    %1495 = vmatpush2.bf16.msra.mxu0 %v1306
    %1496 = vmatprep.subr.bf16.mxu0 %v1304
    %1497 = vmatpush2.bf16.msra.mxu0 %v1303
    %1498 = vmatprep.subr.bf16.mxu0 %v1301
    %1499 = vmatpush2.bf16.msra.mxu0 %v1300
    %1500 = vmatprep.mubr.bf16.mxu0 %v748
    %1501 = vmatmul.mubr.bf16.gmra.mxu0 %v747
    %v1502 = vpop.f32.mrf.mxu0
    %v1503 = vadd.f32 %v944, %v1502
    %v1504 = vpop.f32.mrf.mxu0
    %v1505 = vadd.f32 %v948, %v1504
    %v1506 = vpop.f32.mrf.mxu0
    %v1507 = vadd.f32 %v944, %v1506
    %v1508 = vpop.f32.mrf.mxu0
    %v1509 = vadd.f32 %v948, %v1508
    %1510 = vmatprep.mubr.bf16.mxu0 %v752
    %1511 = vmatmul.mubr.bf16.gmra.mxu0 %v751
    %v1512 = vpop.f32.mrf.mxu0
    %v1513 = vadd.f32 %v944, %v1512
    %v1514 = vpop.f32.mrf.mxu0
    %v1515 = vadd.f32 %v948, %v1514
    %v1516 = vpop.f32.mrf.mxu0
    %v1517 = vadd.f32 %v944, %v1516
    %v1518 = vpop.f32.mrf.mxu0
    %v1519 = vadd.f32 %v948, %v1518
    %1520 = vmatprep.mubr.bf16.mxu0 %v756
    %1521 = vmatmul.mubr.bf16.gmra.mxu0 %v755
    %v1522 = vpop.f32.mrf.mxu0
    %v1523 = vadd.f32 %v944, %v1522
    %v1524 = vpop.f32.mrf.mxu0
    %v1525 = vadd.f32 %v948, %v1524
    %v1526 = vpop.f32.mrf.mxu0
    %v1527 = vadd.f32 %v944, %v1526
    %v1528 = vpop.f32.mrf.mxu0
    %v1529 = vadd.f32 %v948, %v1528
    %1530 = vmatprep.mubr.bf16.mxu0 %v760
    %1531 = vmatmul.mubr.bf16.gmra.mxu0 %v759
    %v1532 = vpop.f32.mrf.mxu0
    %v1533 = vadd.f32 %v944, %v1532
    %v1534 = vpop.f32.mrf.mxu0
    %v1535 = vadd.f32 %v948, %v1534
    %v1536 = vpop.f32.mrf.mxu0
    %v1537 = vadd.f32 %v944, %v1536
    %v1538 = vpop.f32.mrf.mxu0
    %v1539 = vadd.f32 %v948, %v1538
    %1540 = vmatprep.mubr.bf16.mxu0 %v764
    %1541 = vmatmul.mubr.bf16.gmra.mxu0 %v763
    %v1542 = vpop.f32.mrf.mxu0
    %v1543 = vadd.f32 %v944, %v1542
    %v1544 = vpop.f32.mrf.mxu0
    %v1545 = vadd.f32 %v948, %v1544
    %v1546 = vpop.f32.mrf.mxu0
    %v1547 = vadd.f32 %v944, %v1546
    %v1548 = vpop.f32.mrf.mxu0
    %v1549 = vadd.f32 %v948, %v1548
    %1550 = vmatprep.mubr.bf16.mxu0 %v768
    %1551 = vmatmul.mubr.bf16.gmra.mxu0 %v767
    %v1552 = vpop.f32.mrf.mxu0
    %v1553 = vadd.f32 %v944, %v1552
    %v1554 = vpop.f32.mrf.mxu0
    %v1555 = vadd.f32 %v948, %v1554
    %v1556 = vpop.f32.mrf.mxu0
    %v1557 = vadd.f32 %v944, %v1556
    %v1558 = vpop.f32.mrf.mxu0
    %v1559 = vadd.f32 %v948, %v1558
    %1560 = vmatprep.mubr.bf16.mxu0 %v772
    %1561 = vmatmul.mubr.bf16.gmra.mxu0 %v771
    %v1562 = vpop.f32.mrf.mxu0
    %v1563 = vadd.f32 %v944, %v1562
    %v1564 = vpop.f32.mrf.mxu0
    %v1565 = vadd.f32 %v948, %v1564
    %v1566 = vpop.f32.mrf.mxu0
    %v1567 = vadd.f32 %v944, %v1566
    %v1568 = vpop.f32.mrf.mxu0
    %v1569 = vadd.f32 %v948, %v1568
    %1570 = vmatprep.mubr.bf16.mxu0 %v776
    %1571 = vmatmul.mubr.bf16.gmra.mxu0 %v775
    %v1572 = vpop.f32.mrf.mxu0
    %v1573 = vadd.f32 %v944, %v1572
    %v1574 = vpop.f32.mrf.mxu0
    %v1575 = vadd.f32 %v948, %v1574
    %v1576 = vpop.f32.mrf.mxu0
    %v1577 = vadd.f32 %v944, %v1576
    %v1578 = vpop.f32.mrf.mxu0
    %v1579 = vadd.f32 %v948, %v1578
    %1580 = vmatprep.mubr.bf16.mxu0 %v780
    %1581 = vmatmul.mubr.bf16.gmra.mxu0 %v779
    %v1582 = vpop.f32.mrf.mxu0
    %v1583 = vadd.f32 %v944, %v1582
    %v1584 = vpop.f32.mrf.mxu0
    %v1585 = vadd.f32 %v948, %v1584
    %v1586 = vpop.f32.mrf.mxu0
    %v1587 = vadd.f32 %v944, %v1586
    %v1588 = vpop.f32.mrf.mxu0
    %v1589 = vadd.f32 %v948, %v1588
    %1590 = vmatprep.mubr.bf16.mxu0 %v784
    %1591 = vmatmul.mubr.bf16.gmra.mxu0 %v783
    %v1592 = vpop.f32.mrf.mxu0
    %v1593 = vadd.f32 %v944, %v1592
    %v1594 = vpop.f32.mrf.mxu0
    %v1595 = vadd.f32 %v948, %v1594
    %v1596 = vpop.f32.mrf.mxu0
    %v1597 = vadd.f32 %v944, %v1596
    %v1598 = vpop.f32.mrf.mxu0
    %v1599 = vadd.f32 %v948, %v1598
    %1600 = vmatprep.mubr.bf16.mxu0 %v788
    %1601 = vmatmul.mubr.bf16.gmra.mxu0 %v787
    %v1602 = vpop.f32.mrf.mxu0
    %v1603 = vadd.f32 %v944, %v1602
    %v1604 = vpop.f32.mrf.mxu0
    %v1605 = vadd.f32 %v948, %v1604
    %v1606 = vpop.f32.mrf.mxu0
    %v1607 = vadd.f32 %v944, %v1606
    %v1608 = vpop.f32.mrf.mxu0
    %v1609 = vadd.f32 %v948, %v1608
    %1610 = vmatprep.mubr.bf16.mxu0 %v792
    %1611 = vmatmul.mubr.bf16.gmra.mxu0 %v791
    %v1612 = vpop.f32.mrf.mxu0
    %v1613 = vadd.f32 %v944, %v1612
    %v1614 = vpop.f32.mrf.mxu0
    %v1615 = vadd.f32 %v948, %v1614
    %v1616 = vpop.f32.mrf.mxu0
    %v1617 = vadd.f32 %v944, %v1616
    %v1618 = vpop.f32.mrf.mxu0
    %v1619 = vadd.f32 %v948, %v1618
    %1620 = vmatprep.mubr.bf16.mxu0 %v796
    %1621 = vmatmul.mubr.bf16.gmra.mxu0 %v795
    %v1622 = vpop.f32.mrf.mxu0
    %v1623 = vadd.f32 %v944, %v1622
    %v1624 = vpop.f32.mrf.mxu0
    %v1625 = vadd.f32 %v948, %v1624
    %v1626 = vpop.f32.mrf.mxu0
    %v1627 = vadd.f32 %v944, %v1626
    %v1628 = vpop.f32.mrf.mxu0
    %v1629 = vadd.f32 %v948, %v1628
    %1630 = vmatprep.mubr.bf16.mxu0 %v800
    %1631 = vmatmul.mubr.bf16.gmra.mxu0 %v799
    %v1632 = vpop.f32.mrf.mxu0
    %v1633 = vadd.f32 %v944, %v1632
    %v1634 = vpop.f32.mrf.mxu0
    %v1635 = vadd.f32 %v948, %v1634
    %v1636 = vpop.f32.mrf.mxu0
    %v1637 = vadd.f32 %v944, %v1636
    %v1638 = vpop.f32.mrf.mxu0
    %v1639 = vadd.f32 %v948, %v1638
    %1640 = vmatprep.mubr.bf16.mxu0 %v804
    %1641 = vmatmul.mubr.bf16.gmra.mxu0 %v803
    %v1642 = vpop.f32.mrf.mxu0
    %v1643 = vadd.f32 %v944, %v1642
    %v1644 = vpop.f32.mrf.mxu0
    %v1645 = vadd.f32 %v948, %v1644
    %v1646 = vpop.f32.mrf.mxu0
    %v1647 = vadd.f32 %v944, %v1646
    %v1648 = vpop.f32.mrf.mxu0
    %v1649 = vadd.f32 %v948, %v1648
    %1650 = vmatprep.mubr.bf16.mxu0 %v808
    %1651 = vmatmul.mubr.bf16.gmra.mxu0 %v807
    %v1652 = vpop.f32.mrf.mxu0
    %v1653 = vadd.f32 %v944, %v1652
    %v1654 = vpop.f32.mrf.mxu0
    %v1655 = vadd.f32 %v948, %v1654
    %v1656 = vpop.f32.mrf.mxu0
    %v1657 = vadd.f32 %v944, %v1656
    %v1658 = vpop.f32.mrf.mxu0
    %v1659 = vadd.f32 %v948, %v1658
    %1660 = vdwg.mxu0
    %1661 = vmatprep.subr.bf16.mxu0 %v1346
    %1662 = vmatpush1.bf16.msra.mxu0 %v1345
    %1663 = vmatprep.subr.bf16.mxu0 %v1343
    %1664 = vmatpush1.bf16.msra.mxu0 %v1342
    %1665 = vmatprep.subr.bf16.mxu0 %v1340
    %1666 = vmatpush1.bf16.msra.mxu0 %v1339
    %1667 = vmatprep.subr.bf16.mxu0 %v1337
    %1668 = vmatpush1.bf16.msra.mxu0 %v1336
    %1669 = vmatprep.subr.bf16.mxu0 %v1334
    %1670 = vmatpush1.bf16.msra.mxu0 %v1333
    %1671 = vmatprep.subr.bf16.mxu0 %v1331
    %1672 = vmatpush1.bf16.msra.mxu0 %v1330
    %1673 = vmatprep.subr.bf16.mxu0 %v1328
    %1674 = vmatpush1.bf16.msra.mxu0 %v1327
    %1675 = vmatprep.subr.bf16.mxu0 %v1325
    %1676 = vmatpush1.bf16.msra.mxu0 %v1324
    %1677 = vmatprep.subr.bf16.mxu0 %v1370
    %1678 = vmatpush2.bf16.msra.mxu0 %v1369
    %1679 = vmatprep.subr.bf16.mxu0 %v1367
    %1680 = vmatpush2.bf16.msra.mxu0 %v1366
    %1681 = vmatprep.subr.bf16.mxu0 %v1364
    %1682 = vmatpush2.bf16.msra.mxu0 %v1363
    %1683 = vmatprep.subr.bf16.mxu0 %v1361
    %1684 = vmatpush2.bf16.msra.mxu0 %v1360
    %1685 = vmatprep.subr.bf16.mxu0 %v1358
    %1686 = vmatpush2.bf16.msra.mxu0 %v1357
    %1687 = vmatprep.subr.bf16.mxu0 %v1355
    %1688 = vmatpush2.bf16.msra.mxu0 %v1354
    %1689 = vmatprep.subr.bf16.mxu0 %v1352
    %1690 = vmatpush2.bf16.msra.mxu0 %v1351
    %1691 = vmatprep.subr.bf16.mxu0 %v1349
    %1692 = vmatpush2.bf16.msra.mxu0 %v1348
    %1693 = vmatprep.mubr.bf16.mxu0 %v750
    %1694 = vmatmul.mubr.bf16.gmra.mxu0 %v749
    %v1695 = vpop.f32.mrf.mxu0
    %v1696 = vadd.f32 %v1503, %v1695
    %v1697 = vpop.f32.mrf.mxu0
    %v1698 = vadd.f32 %v1505, %v1697
    %v1699 = vpop.f32.mrf.mxu0
    %v1700 = vadd.f32 %v1507, %v1699
    %v1701 = vpop.f32.mrf.mxu0
    %v1702 = vadd.f32 %v1509, %v1701
    %1703 = vmatprep.mubr.bf16.mxu0 %v754
    %1704 = vmatmul.mubr.bf16.gmra.mxu0 %v753
    %v1705 = vpop.f32.mrf.mxu0
    %v1706 = vadd.f32 %v1513, %v1705
    %v1707 = vpop.f32.mrf.mxu0
    %v1708 = vadd.f32 %v1515, %v1707
    %v1709 = vpop.f32.mrf.mxu0
    %v1710 = vadd.f32 %v1517, %v1709
    %v1711 = vpop.f32.mrf.mxu0
    %v1712 = vadd.f32 %v1519, %v1711
    %1713 = vmatprep.mubr.bf16.mxu0 %v758
    %1714 = vmatmul.mubr.bf16.gmra.mxu0 %v757
    %v1715 = vpop.f32.mrf.mxu0
    %v1716 = vadd.f32 %v1523, %v1715
    %v1717 = vpop.f32.mrf.mxu0
    %v1718 = vadd.f32 %v1525, %v1717
    %v1719 = vpop.f32.mrf.mxu0
    %v1720 = vadd.f32 %v1527, %v1719
    %v1721 = vpop.f32.mrf.mxu0
    %v1722 = vadd.f32 %v1529, %v1721
    %1723 = vmatprep.mubr.bf16.mxu0 %v762
    %1724 = vmatmul.mubr.bf16.gmra.mxu0 %v761
    %v1725 = vpop.f32.mrf.mxu0
    %v1726 = vadd.f32 %v1533, %v1725
    %v1727 = vpop.f32.mrf.mxu0
    %v1728 = vadd.f32 %v1535, %v1727
    %v1729 = vpop.f32.mrf.mxu0
    %v1730 = vadd.f32 %v1537, %v1729
    %v1731 = vpop.f32.mrf.mxu0
    %v1732 = vadd.f32 %v1539, %v1731
    %1733 = vmatprep.mubr.bf16.mxu0 %v766
    %1734 = vmatmul.mubr.bf16.gmra.mxu0 %v765
    %v1735 = vpop.f32.mrf.mxu0
    %v1736 = vadd.f32 %v1543, %v1735
    %v1737 = vpop.f32.mrf.mxu0
    %v1738 = vadd.f32 %v1545, %v1737
    %v1739 = vpop.f32.mrf.mxu0
    %v1740 = vadd.f32 %v1547, %v1739
    %v1741 = vpop.f32.mrf.mxu0
    %v1742 = vadd.f32 %v1549, %v1741
    %1743 = vmatprep.mubr.bf16.mxu0 %v770
    %1744 = vmatmul.mubr.bf16.gmra.mxu0 %v769
    %v1745 = vpop.f32.mrf.mxu0
    %v1746 = vadd.f32 %v1553, %v1745
    %v1747 = vpop.f32.mrf.mxu0
    %v1748 = vadd.f32 %v1555, %v1747
    %v1749 = vpop.f32.mrf.mxu0
    %v1750 = vadd.f32 %v1557, %v1749
    %v1751 = vpop.f32.mrf.mxu0
    %v1752 = vadd.f32 %v1559, %v1751
    %1753 = vmatprep.mubr.bf16.mxu0 %v774
    %1754 = vmatmul.mubr.bf16.gmra.mxu0 %v773
    %v1755 = vpop.f32.mrf.mxu0
    %v1756 = vadd.f32 %v1563, %v1755
    %v1757 = vpop.f32.mrf.mxu0
    %v1758 = vadd.f32 %v1565, %v1757
    %v1759 = vpop.f32.mrf.mxu0
    %v1760 = vadd.f32 %v1567, %v1759
    %v1761 = vpop.f32.mrf.mxu0
    %v1762 = vadd.f32 %v1569, %v1761
    %1763 = vmatprep.mubr.bf16.mxu0 %v778
    %1764 = vmatmul.mubr.bf16.gmra.mxu0 %v777
    %v1765 = vpop.f32.mrf.mxu0
    %v1766 = vadd.f32 %v1573, %v1765
    %v1767 = vpop.f32.mrf.mxu0
    %v1768 = vadd.f32 %v1575, %v1767
    %v1769 = vpop.f32.mrf.mxu0
    %v1770 = vadd.f32 %v1577, %v1769
    %v1771 = vpop.f32.mrf.mxu0
    %v1772 = vadd.f32 %v1579, %v1771
    %1773 = vmatprep.mubr.bf16.mxu0 %v782
    %1774 = vmatmul.mubr.bf16.gmra.mxu0 %v781
    %v1775 = vpop.f32.mrf.mxu0
    %v1776 = vadd.f32 %v1583, %v1775
    %v1777 = vpop.f32.mrf.mxu0
    %v1778 = vadd.f32 %v1585, %v1777
    %v1779 = vpop.f32.mrf.mxu0
    %v1780 = vadd.f32 %v1587, %v1779
    %v1781 = vpop.f32.mrf.mxu0
    %v1782 = vadd.f32 %v1589, %v1781
    %1783 = vmatprep.mubr.bf16.mxu0 %v786
    %1784 = vmatmul.mubr.bf16.gmra.mxu0 %v785
    %v1785 = vpop.f32.mrf.mxu0
    %v1786 = vadd.f32 %v1593, %v1785
    %v1787 = vpop.f32.mrf.mxu0
    %v1788 = vadd.f32 %v1595, %v1787
    %v1789 = vpop.f32.mrf.mxu0
    %v1790 = vadd.f32 %v1597, %v1789
    %v1791 = vpop.f32.mrf.mxu0
    %v1792 = vadd.f32 %v1599, %v1791
    %1793 = vmatprep.mubr.bf16.mxu0 %v790
    %1794 = vmatmul.mubr.bf16.gmra.mxu0 %v789
    %v1795 = vpop.f32.mrf.mxu0
    %v1796 = vadd.f32 %v1603, %v1795
    %v1797 = vpop.f32.mrf.mxu0
    %v1798 = vadd.f32 %v1605, %v1797
    %v1799 = vpop.f32.mrf.mxu0
    %v1800 = vadd.f32 %v1607, %v1799
    %v1801 = vpop.f32.mrf.mxu0
    %v1802 = vadd.f32 %v1609, %v1801
    %1803 = vmatprep.mubr.bf16.mxu0 %v794
    %1804 = vmatmul.mubr.bf16.gmra.mxu0 %v793
    %v1805 = vpop.f32.mrf.mxu0
    %v1806 = vadd.f32 %v1613, %v1805
    %v1807 = vpop.f32.mrf.mxu0
    %v1808 = vadd.f32 %v1615, %v1807
    %v1809 = vpop.f32.mrf.mxu0
    %v1810 = vadd.f32 %v1617, %v1809
    %v1811 = vpop.f32.mrf.mxu0
    %v1812 = vadd.f32 %v1619, %v1811
    %1813 = vmatprep.mubr.bf16.mxu0 %v798
    %1814 = vmatmul.mubr.bf16.gmra.mxu0 %v797
    %v1815 = vpop.f32.mrf.mxu0
    %v1816 = vadd.f32 %v1623, %v1815
    %v1817 = vpop.f32.mrf.mxu0
    %v1818 = vadd.f32 %v1625, %v1817
    %v1819 = vpop.f32.mrf.mxu0
    %v1820 = vadd.f32 %v1627, %v1819
    %v1821 = vpop.f32.mrf.mxu0
    %v1822 = vadd.f32 %v1629, %v1821
    %1823 = vmatprep.mubr.bf16.mxu0 %v802
    %1824 = vmatmul.mubr.bf16.gmra.mxu0 %v801
    %v1825 = vpop.f32.mrf.mxu0
    %v1826 = vadd.f32 %v1633, %v1825
    %v1827 = vpop.f32.mrf.mxu0
    %v1828 = vadd.f32 %v1635, %v1827
    %v1829 = vpop.f32.mrf.mxu0
    %v1830 = vadd.f32 %v1637, %v1829
    %v1831 = vpop.f32.mrf.mxu0
    %v1832 = vadd.f32 %v1639, %v1831
    %1833 = vmatprep.mubr.bf16.mxu0 %v806
    %1834 = vmatmul.mubr.bf16.gmra.mxu0 %v805
    %v1835 = vpop.f32.mrf.mxu0
    %v1836 = vadd.f32 %v1643, %v1835
    %v1837 = vpop.f32.mrf.mxu0
    %v1838 = vadd.f32 %v1645, %v1837
    %v1839 = vpop.f32.mrf.mxu0
    %v1840 = vadd.f32 %v1647, %v1839
    %v1841 = vpop.f32.mrf.mxu0
    %v1842 = vadd.f32 %v1649, %v1841
    %1843 = vmatprep.mubr.bf16.mxu0 %v810
    %1844 = vmatmul.mubr.bf16.gmra.mxu0 %v809
    %v1845 = vpop.f32.mrf.mxu0
    %v1846 = vadd.f32 %v1653, %v1845
    %v1847 = vpop.f32.mrf.mxu0
    %v1848 = vadd.f32 %v1655, %v1847
    %v1849 = vpop.f32.mrf.mxu0
    %v1850 = vadd.f32 %v1657, %v1849
    %v1851 = vpop.f32.mrf.mxu0
    %v1852 = vadd.f32 %v1659, %v1851
    %1853 = vdwg.mxu0
    %1854 = vmatprep.subr.bf16.mxu0 0
    %1855 = vmatpush1.bf16.msra.mxu0 %v1299
    %1856 = vmatprep.subr.bf16.mxu0 0
    %1857 = vmatpush1.bf16.msra.mxu0 %v1296
    %1858 = vmatprep.subr.bf16.mxu0 0
    %1859 = vmatpush1.bf16.msra.mxu0 %v1293
    %1860 = vmatprep.subr.bf16.mxu0 0
    %1861 = vmatpush1.bf16.msra.mxu0 %v1290
    %1862 = vmatprep.subr.bf16.mxu0 0
    %1863 = vmatpush1.bf16.msra.mxu0 %v1287
    %1864 = vmatprep.subr.bf16.mxu0 0
    %1865 = vmatpush1.bf16.msra.mxu0 %v1284
    %1866 = vmatprep.subr.bf16.mxu0 0
    %1867 = vmatpush1.bf16.msra.mxu0 %v1281
    %1868 = vmatprep.subr.bf16.mxu0 0
    %1869 = vmatpush1.bf16.msra.mxu0 %v1278
    %1870 = vmatprep.subr.bf16.mxu0 0
    %1871 = vmatpush2.bf16.msra.mxu0 %v1323
    %1872 = vmatprep.subr.bf16.mxu0 0
    %1873 = vmatpush2.bf16.msra.mxu0 %v1320
    %1874 = vmatprep.subr.bf16.mxu0 0
    %1875 = vmatpush2.bf16.msra.mxu0 %v1317
    %1876 = vmatprep.subr.bf16.mxu0 0
    %1877 = vmatpush2.bf16.msra.mxu0 %v1314
    %1878 = vmatprep.subr.bf16.mxu0 0
    %1879 = vmatpush2.bf16.msra.mxu0 %v1311
    %1880 = vmatprep.subr.bf16.mxu0 0
    %1881 = vmatpush2.bf16.msra.mxu0 %v1308
    %1882 = vmatprep.subr.bf16.mxu0 0
    %1883 = vmatpush2.bf16.msra.mxu0 %v1305
    %1884 = vmatprep.subr.bf16.mxu0 0
    %1885 = vmatpush2.bf16.msra.mxu0 %v1302
    %1886 = vmatprep.mubr.bf16.mxu0 %v748
    %1887 = vmatmul.mubr.bf16.gmra.mxu0 %v747
    %v1888 = vpop.f32.mrf.mxu0
    %v1889 = vadd.f32 %v952, %v1888
    %v1890 = vpop.f32.mrf.mxu0
    %v1891 = vpop.f32.mrf.mxu0
    %v1892 = vadd.f32 %v952, %v1891
    %v1893 = vpop.f32.mrf.mxu0
    %1894 = vmatprep.mubr.bf16.mxu0 %v752
    %1895 = vmatmul.mubr.bf16.gmra.mxu0 %v751
    %v1896 = vpop.f32.mrf.mxu0
    %v1897 = vadd.f32 %v952, %v1896
    %v1898 = vpop.f32.mrf.mxu0
    %v1899 = vpop.f32.mrf.mxu0
    %v1900 = vadd.f32 %v952, %v1899
    %v1901 = vpop.f32.mrf.mxu0
    %1902 = vmatprep.mubr.bf16.mxu0 %v756
    %1903 = vmatmul.mubr.bf16.gmra.mxu0 %v755
    %v1904 = vpop.f32.mrf.mxu0
    %v1905 = vadd.f32 %v952, %v1904
    %v1906 = vpop.f32.mrf.mxu0
    %v1907 = vpop.f32.mrf.mxu0
    %v1908 = vadd.f32 %v952, %v1907
    %v1909 = vpop.f32.mrf.mxu0
    %1910 = vmatprep.mubr.bf16.mxu0 %v760
    %1911 = vmatmul.mubr.bf16.gmra.mxu0 %v759
    %v1912 = vpop.f32.mrf.mxu0
    %v1913 = vadd.f32 %v952, %v1912
    %v1914 = vpop.f32.mrf.mxu0
    %v1915 = vpop.f32.mrf.mxu0
    %v1916 = vadd.f32 %v952, %v1915
    %v1917 = vpop.f32.mrf.mxu0
    %1918 = vmatprep.mubr.bf16.mxu0 %v764
    %1919 = vmatmul.mubr.bf16.gmra.mxu0 %v763
    %v1920 = vpop.f32.mrf.mxu0
    %v1921 = vadd.f32 %v952, %v1920
    %v1922 = vpop.f32.mrf.mxu0
    %v1923 = vpop.f32.mrf.mxu0
    %v1924 = vadd.f32 %v952, %v1923
    %v1925 = vpop.f32.mrf.mxu0
    %1926 = vmatprep.mubr.bf16.mxu0 %v768
    %1927 = vmatmul.mubr.bf16.gmra.mxu0 %v767
    %v1928 = vpop.f32.mrf.mxu0
    %v1929 = vadd.f32 %v952, %v1928
    %v1930 = vpop.f32.mrf.mxu0
    %v1931 = vpop.f32.mrf.mxu0
    %v1932 = vadd.f32 %v952, %v1931
    %v1933 = vpop.f32.mrf.mxu0
    %1934 = vmatprep.mubr.bf16.mxu0 %v772
    %1935 = vmatmul.mubr.bf16.gmra.mxu0 %v771
    %v1936 = vpop.f32.mrf.mxu0
    %v1937 = vadd.f32 %v952, %v1936
    %v1938 = vpop.f32.mrf.mxu0
    %v1939 = vpop.f32.mrf.mxu0
    %v1940 = vadd.f32 %v952, %v1939
    %v1941 = vpop.f32.mrf.mxu0
    %1942 = vmatprep.mubr.bf16.mxu0 %v776
    %1943 = vmatmul.mubr.bf16.gmra.mxu0 %v775
    %v1944 = vpop.f32.mrf.mxu0
    %v1945 = vadd.f32 %v952, %v1944
    %v1946 = vpop.f32.mrf.mxu0
    %v1947 = vpop.f32.mrf.mxu0
    %v1948 = vadd.f32 %v952, %v1947
    %v1949 = vpop.f32.mrf.mxu0
    %1950 = vmatprep.mubr.bf16.mxu0 %v780
    %1951 = vmatmul.mubr.bf16.gmra.mxu0 %v779
    %v1952 = vpop.f32.mrf.mxu0
    %v1953 = vadd.f32 %v952, %v1952
    %v1954 = vpop.f32.mrf.mxu0
    %v1955 = vpop.f32.mrf.mxu0
    %v1956 = vadd.f32 %v952, %v1955
    %v1957 = vpop.f32.mrf.mxu0
    %1958 = vmatprep.mubr.bf16.mxu0 %v784
    %1959 = vmatmul.mubr.bf16.gmra.mxu0 %v783
    %v1960 = vpop.f32.mrf.mxu0
    %v1961 = vadd.f32 %v952, %v1960
    %v1962 = vpop.f32.mrf.mxu0
    %v1963 = vpop.f32.mrf.mxu0
    %v1964 = vadd.f32 %v952, %v1963
    %v1965 = vpop.f32.mrf.mxu0
    %1966 = vmatprep.mubr.bf16.mxu0 %v788
    %1967 = vmatmul.mubr.bf16.gmra.mxu0 %v787
    %v1968 = vpop.f32.mrf.mxu0
    %v1969 = vadd.f32 %v952, %v1968
    %v1970 = vpop.f32.mrf.mxu0
    %v1971 = vpop.f32.mrf.mxu0
    %v1972 = vadd.f32 %v952, %v1971
    %v1973 = vpop.f32.mrf.mxu0
    %1974 = vmatprep.mubr.bf16.mxu0 %v792
    %1975 = vmatmul.mubr.bf16.gmra.mxu0 %v791
    %v1976 = vpop.f32.mrf.mxu0
    %v1977 = vadd.f32 %v952, %v1976
    %v1978 = vpop.f32.mrf.mxu0
    %v1979 = vpop.f32.mrf.mxu0
    %v1980 = vadd.f32 %v952, %v1979
    %v1981 = vpop.f32.mrf.mxu0
    %1982 = vmatprep.mubr.bf16.mxu0 %v796
    %1983 = vmatmul.mubr.bf16.gmra.mxu0 %v795
    %v1984 = vpop.f32.mrf.mxu0
    %v1985 = vadd.f32 %v952, %v1984
    %v1986 = vpop.f32.mrf.mxu0
    %v1987 = vpop.f32.mrf.mxu0
    %v1988 = vadd.f32 %v952, %v1987
    %v1989 = vpop.f32.mrf.mxu0
    %1990 = vmatprep.mubr.bf16.mxu0 %v800
    %1991 = vmatmul.mubr.bf16.gmra.mxu0 %v799
    %v1992 = vpop.f32.mrf.mxu0
    %v1993 = vadd.f32 %v952, %v1992
    %v1994 = vpop.f32.mrf.mxu0
    %v1995 = vpop.f32.mrf.mxu0
    %v1996 = vadd.f32 %v952, %v1995
    %v1997 = vpop.f32.mrf.mxu0
    %1998 = vmatprep.mubr.bf16.mxu0 %v804
    %1999 = vmatmul.mubr.bf16.gmra.mxu0 %v803
    %v2000 = vpop.f32.mrf.mxu0
    %v2001 = vadd.f32 %v952, %v2000
    %v2002 = vpop.f32.mrf.mxu0
    %v2003 = vpop.f32.mrf.mxu0
    %v2004 = vadd.f32 %v952, %v2003
    %v2005 = vpop.f32.mrf.mxu0
    %2006 = vmatprep.mubr.bf16.mxu0 %v808
    %2007 = vmatmul.mubr.bf16.gmra.mxu0 %v807
    %v2008 = vpop.f32.mrf.mxu0
    %v2009 = vadd.f32 %v952, %v2008
    %v2010 = vpop.f32.mrf.mxu0
    %v2011 = vpop.f32.mrf.mxu0
    %v2012 = vadd.f32 %v952, %v2011
    %v2013 = vpop.f32.mrf.mxu0
    %2014 = vdwg.mxu0
    %2015 = vmatprep.subr.bf16.mxu0 0
    %2016 = vmatpush1.bf16.msra.mxu0 %v1347
    %2017 = vmatprep.subr.bf16.mxu0 0
    %2018 = vmatpush1.bf16.msra.mxu0 %v1344
    %2019 = vmatprep.subr.bf16.mxu0 0
    %2020 = vmatpush1.bf16.msra.mxu0 %v1341
    %2021 = vmatprep.subr.bf16.mxu0 0
    %2022 = vmatpush1.bf16.msra.mxu0 %v1338
    %2023 = vmatprep.subr.bf16.mxu0 0
    %2024 = vmatpush1.bf16.msra.mxu0 %v1335
    %2025 = vmatprep.subr.bf16.mxu0 0
    %2026 = vmatpush1.bf16.msra.mxu0 %v1332
    %2027 = vmatprep.subr.bf16.mxu0 0
    %2028 = vmatpush1.bf16.msra.mxu0 %v1329
    %2029 = vmatprep.subr.bf16.mxu0 0
    %2030 = vmatpush1.bf16.msra.mxu0 %v1326
    %2031 = vmatprep.subr.bf16.mxu0 0
    %2032 = vmatpush2.bf16.msra.mxu0 %v1371
    %2033 = vmatprep.subr.bf16.mxu0 0
    %2034 = vmatpush2.bf16.msra.mxu0 %v1368
    %2035 = vmatprep.subr.bf16.mxu0 0
    %2036 = vmatpush2.bf16.msra.mxu0 %v1365
    %2037 = vmatprep.subr.bf16.mxu0 0
    %2038 = vmatpush2.bf16.msra.mxu0 %v1362
    %2039 = vmatprep.subr.bf16.mxu0 0
    %2040 = vmatpush2.bf16.msra.mxu0 %v1359
    %2041 = vmatprep.subr.bf16.mxu0 0
    %2042 = vmatpush2.bf16.msra.mxu0 %v1356
    %2043 = vmatprep.subr.bf16.mxu0 0
    %2044 = vmatpush2.bf16.msra.mxu0 %v1353
    %2045 = vmatprep.subr.bf16.mxu0 0
    %2046 = vmatpush2.bf16.msra.mxu0 %v1350
    %2047 = vmatprep.mubr.bf16.mxu0 %v750
    %2048 = vmatmul.mubr.bf16.gmra.mxu0 %v749
    %v2049 = vpop.f32.mrf.mxu0
    %v2050 = vadd.f32 %v1889, %v2049
    %v2051 = vpop.f32.mrf.mxu0
    %v2052 = vpop.f32.mrf.mxu0
    %v2053 = vadd.f32 %v1892, %v2052
    %v2054 = vpop.f32.mrf.mxu0
    %2055 = vmatprep.mubr.bf16.mxu0 %v754
    %2056 = vmatmul.mubr.bf16.gmra.mxu0 %v753
    %v2057 = vpop.f32.mrf.mxu0
    %v2058 = vadd.f32 %v1897, %v2057
    %v2059 = vpop.f32.mrf.mxu0
    %v2060 = vpop.f32.mrf.mxu0
    %v2061 = vadd.f32 %v1900, %v2060
    %v2062 = vpop.f32.mrf.mxu0
    %2063 = vmatprep.mubr.bf16.mxu0 %v758
    %2064 = vmatmul.mubr.bf16.gmra.mxu0 %v757
    %v2065 = vpop.f32.mrf.mxu0
    %v2066 = vadd.f32 %v1905, %v2065
    %v2067 = vpop.f32.mrf.mxu0
    %v2068 = vpop.f32.mrf.mxu0
    %v2069 = vadd.f32 %v1908, %v2068
    %v2070 = vpop.f32.mrf.mxu0
    %2071 = vmatprep.mubr.bf16.mxu0 %v762
    %2072 = vmatmul.mubr.bf16.gmra.mxu0 %v761
    %v2073 = vpop.f32.mrf.mxu0
    %v2074 = vadd.f32 %v1913, %v2073
    %v2075 = vpop.f32.mrf.mxu0
    %v2076 = vpop.f32.mrf.mxu0
    %v2077 = vadd.f32 %v1916, %v2076
    %v2078 = vpop.f32.mrf.mxu0
    %2079 = vmatprep.mubr.bf16.mxu0 %v766
    %2080 = vmatmul.mubr.bf16.gmra.mxu0 %v765
    %v2081 = vpop.f32.mrf.mxu0
    %v2082 = vadd.f32 %v1921, %v2081
    %v2083 = vpop.f32.mrf.mxu0
    %v2084 = vpop.f32.mrf.mxu0
    %v2085 = vadd.f32 %v1924, %v2084
    %v2086 = vpop.f32.mrf.mxu0
    %2087 = vmatprep.mubr.bf16.mxu0 %v770
    %2088 = vmatmul.mubr.bf16.gmra.mxu0 %v769
    %v2089 = vpop.f32.mrf.mxu0
    %v2090 = vadd.f32 %v1929, %v2089
    %v2091 = vpop.f32.mrf.mxu0
    %v2092 = vpop.f32.mrf.mxu0
    %v2093 = vadd.f32 %v1932, %v2092
    %v2094 = vpop.f32.mrf.mxu0
    %2095 = vmatprep.mubr.bf16.mxu0 %v774
    %2096 = vmatmul.mubr.bf16.gmra.mxu0 %v773
    %v2097 = vpop.f32.mrf.mxu0
    %v2098 = vadd.f32 %v1937, %v2097
    %v2099 = vpop.f32.mrf.mxu0
    %v2100 = vpop.f32.mrf.mxu0
    %v2101 = vadd.f32 %v1940, %v2100
    %v2102 = vpop.f32.mrf.mxu0
    %2103 = vmatprep.mubr.bf16.mxu0 %v778
    %2104 = vmatmul.mubr.bf16.gmra.mxu0 %v777
    %v2105 = vpop.f32.mrf.mxu0
    %v2106 = vadd.f32 %v1945, %v2105
    %v2107 = vpop.f32.mrf.mxu0
    %v2108 = vpop.f32.mrf.mxu0
    %v2109 = vadd.f32 %v1948, %v2108
    %v2110 = vpop.f32.mrf.mxu0
    %2111 = vmatprep.mubr.bf16.mxu0 %v782
    %2112 = vmatmul.mubr.bf16.gmra.mxu0 %v781
    %v2113 = vpop.f32.mrf.mxu0
    %v2114 = vadd.f32 %v1953, %v2113
    %v2115 = vpop.f32.mrf.mxu0
    %v2116 = vpop.f32.mrf.mxu0
    %v2117 = vadd.f32 %v1956, %v2116
    %v2118 = vpop.f32.mrf.mxu0
    %2119 = vmatprep.mubr.bf16.mxu0 %v786
    %2120 = vmatmul.mubr.bf16.gmra.mxu0 %v785
    %v2121 = vpop.f32.mrf.mxu0
    %v2122 = vadd.f32 %v1961, %v2121
    %v2123 = vpop.f32.mrf.mxu0
    %v2124 = vpop.f32.mrf.mxu0
    %v2125 = vadd.f32 %v1964, %v2124
    %v2126 = vpop.f32.mrf.mxu0
    %2127 = vmatprep.mubr.bf16.mxu0 %v790
    %2128 = vmatmul.mubr.bf16.gmra.mxu0 %v789
    %v2129 = vpop.f32.mrf.mxu0
    %v2130 = vadd.f32 %v1969, %v2129
    %v2131 = vpop.f32.mrf.mxu0
    %v2132 = vpop.f32.mrf.mxu0
    %v2133 = vadd.f32 %v1972, %v2132
    %v2134 = vpop.f32.mrf.mxu0
    %2135 = vmatprep.mubr.bf16.mxu0 %v794
    %2136 = vmatmul.mubr.bf16.gmra.mxu0 %v793
    %v2137 = vpop.f32.mrf.mxu0
    %v2138 = vadd.f32 %v1977, %v2137
    %v2139 = vpop.f32.mrf.mxu0
    %v2140 = vpop.f32.mrf.mxu0
    %v2141 = vadd.f32 %v1980, %v2140
    %v2142 = vpop.f32.mrf.mxu0
    %2143 = vmatprep.mubr.bf16.mxu0 %v798
    %2144 = vmatmul.mubr.bf16.gmra.mxu0 %v797
    %v2145 = vpop.f32.mrf.mxu0
    %v2146 = vadd.f32 %v1985, %v2145
    %v2147 = vpop.f32.mrf.mxu0
    %v2148 = vpop.f32.mrf.mxu0
    %v2149 = vadd.f32 %v1988, %v2148
    %v2150 = vpop.f32.mrf.mxu0
    %2151 = vmatprep.mubr.bf16.mxu0 %v802
    %2152 = vmatmul.mubr.bf16.gmra.mxu0 %v801
    %v2153 = vpop.f32.mrf.mxu0
    %v2154 = vadd.f32 %v1993, %v2153
    %v2155 = vpop.f32.mrf.mxu0
    %v2156 = vpop.f32.mrf.mxu0
    %v2157 = vadd.f32 %v1996, %v2156
    %v2158 = vpop.f32.mrf.mxu0
    %2159 = vmatprep.mubr.bf16.mxu0 %v806
    %2160 = vmatmul.mubr.bf16.gmra.mxu0 %v805
    %v2161 = vpop.f32.mrf.mxu0
    %v2162 = vadd.f32 %v2001, %v2161
    %v2163 = vpop.f32.mrf.mxu0
    %v2164 = vpop.f32.mrf.mxu0
    %v2165 = vadd.f32 %v2004, %v2164
    %v2166 = vpop.f32.mrf.mxu0
    %2167 = vmatprep.mubr.bf16.mxu0 %v810
    %2168 = vmatmul.mubr.bf16.gmra.mxu0 %v809
    %v2169 = vpop.f32.mrf.mxu0
    %v2170 = vadd.f32 %v2009, %v2169
    %v2171 = vpop.f32.mrf.mxu0
    %v2172 = vpop.f32.mrf.mxu0
    %v2173 = vadd.f32 %v2012, %v2172
    %v2174 = vpop.f32.mrf.mxu0
    %2175 = vdwg.mxu0
    %v2176 = vmax.f32 %v1696, 0.0
    %v2177 = vmax.f32 %v1698, 0.0
    %v2178 = vmax.f32 %v2050, 0.0
    %v2179 = vmax.f32 %v1700, 0.0
    %v2180 = vmax.f32 %v1702, 0.0
    %v2181 = vmax.f32 %v2053, 0.0
    %v2182 = vmax.f32 %v1706, 0.0
    %v2183 = vmax.f32 %v1708, 0.0
    %v2184 = vmax.f32 %v2058, 0.0
    %v2185 = vmax.f32 %v1710, 0.0
    %v2186 = vmax.f32 %v1712, 0.0
    %v2187 = vmax.f32 %v2061, 0.0
    %v2188 = vmax.f32 %v1716, 0.0
    %v2189 = vmax.f32 %v1718, 0.0
    %v2190 = vmax.f32 %v2066, 0.0
    %v2191 = vmax.f32 %v1720, 0.0
    %v2192 = vmax.f32 %v1722, 0.0
    %v2193 = vmax.f32 %v2069, 0.0
    %v2194 = vmax.f32 %v1726, 0.0
    %v2195 = vmax.f32 %v1728, 0.0
    %v2196 = vmax.f32 %v2074, 0.0
    %v2197 = vmax.f32 %v1730, 0.0
    %v2198 = vmax.f32 %v1732, 0.0
    %v2199 = vmax.f32 %v2077, 0.0
    %v2200 = vmax.f32 %v1736, 0.0
    %v2201 = vmax.f32 %v1738, 0.0
    %v2202 = vmax.f32 %v2082, 0.0
    %v2203 = vmax.f32 %v1740, 0.0
    %v2204 = vmax.f32 %v1742, 0.0
    %v2205 = vmax.f32 %v2085, 0.0
    %v2206 = vmax.f32 %v1746, 0.0
    %v2207 = vmax.f32 %v1748, 0.0
    %v2208 = vmax.f32 %v2090, 0.0
    %v2209 = vmax.f32 %v1750, 0.0
    %v2210 = vmax.f32 %v1752, 0.0
    %v2211 = vmax.f32 %v2093, 0.0
    %v2212 = vmax.f32 %v1756, 0.0
    %v2213 = vmax.f32 %v1758, 0.0
    %v2214 = vmax.f32 %v2098, 0.0
    %v2215 = vmax.f32 %v1760, 0.0
    %v2216 = vmax.f32 %v1762, 0.0
    %v2217 = vmax.f32 %v2101, 0.0
    %v2218 = vmax.f32 %v1766, 0.0
    %v2219 = vmax.f32 %v1768, 0.0
    %v2220 = vmax.f32 %v2106, 0.0
    %v2221 = vmax.f32 %v1770, 0.0
    %v2222 = vmax.f32 %v1772, 0.0
    %v2223 = vmax.f32 %v2109, 0.0
    %v2224 = vmax.f32 %v1776, 0.0
    %v2225 = vmax.f32 %v1778, 0.0
    %v2226 = vmax.f32 %v2114, 0.0
    %v2227 = vmax.f32 %v1780, 0.0
    %v2228 = vmax.f32 %v1782, 0.0
    %v2229 = vmax.f32 %v2117, 0.0
    %v2230 = vmax.f32 %v1786, 0.0
    %v2231 = vmax.f32 %v1788, 0.0
    %v2232 = vmax.f32 %v2122, 0.0
    %v2233 = vmax.f32 %v1790, 0.0
    %v2234 = vmax.f32 %v1792, 0.0
    %v2235 = vmax.f32 %v2125, 0.0
    %v2236 = vmax.f32 %v1796, 0.0
    %v2237 = vmax.f32 %v1798, 0.0
    %v2238 = vmax.f32 %v2130, 0.0
    %v2239 = vmax.f32 %v1800, 0.0
    %v2240 = vmax.f32 %v1802, 0.0
    %v2241 = vmax.f32 %v2133, 0.0
    %v2242 = vmax.f32 %v1806, 0.0
    %v2243 = vmax.f32 %v1808, 0.0
    %v2244 = vmax.f32 %v2138, 0.0
    %v2245 = vmax.f32 %v1810, 0.0
    %v2246 = vmax.f32 %v1812, 0.0
    %v2247 = vmax.f32 %v2141, 0.0
    %v2248 = vmax.f32 %v1816, 0.0
    %v2249 = vmax.f32 %v1818, 0.0
    %v2250 = vmax.f32 %v2146, 0.0
    %v2251 = vmax.f32 %v1820, 0.0
    %v2252 = vmax.f32 %v1822, 0.0
    %v2253 = vmax.f32 %v2149, 0.0
    %v2254 = vmax.f32 %v1826, 0.0
    %v2255 = vmax.f32 %v1828, 0.0
    %v2256 = vmax.f32 %v2154, 0.0
    %v2257 = vmax.f32 %v1830, 0.0
    %v2258 = vmax.f32 %v1832, 0.0
    %v2259 = vmax.f32 %v2157, 0.0
    %v2260 = vmax.f32 %v1836, 0.0
    %v2261 = vmax.f32 %v1838, 0.0
    %v2262 = vmax.f32 %v2162, 0.0
    %v2263 = vmax.f32 %v1840, 0.0
    %v2264 = vmax.f32 %v1842, 0.0
    %v2265 = vmax.f32 %v2165, 0.0
    %v2266 = vmax.f32 %v1846, 0.0
    %v2267 = vmax.f32 %v1848, 0.0
    %v2268 = vmax.f32 %v2170, 0.0
    %v2269 = vmax.f32 %v1850, 0.0
    %v2270 = vmax.f32 %v1852, 0.0
    %v2271 = vmax.f32 %v2173, 0.0
    %v2272 = vpack.c.bf16 %v2179, %v2176
    %v2273 = vpack.c.bf16 %v2180, %v2177
    %v2274 = vpack.c.bf16 %v2181, %v2178
    %v2275 = vpack.c.bf16 %v2185, %v2182
    %v2276 = vpack.c.bf16 %v2186, %v2183
    %v2277 = vpack.c.bf16 %v2187, %v2184
    %v2278 = vpack.c.bf16 %v2191, %v2188
    %v2279 = vpack.c.bf16 %v2192, %v2189
    %v2280 = vpack.c.bf16 %v2193, %v2190
    %v2281 = vpack.c.bf16 %v2197, %v2194
    %v2282 = vpack.c.bf16 %v2198, %v2195
    %v2283 = vpack.c.bf16 %v2199, %v2196
    %v2284 = vpack.c.bf16 %v2203, %v2200
    %v2285 = vpack.c.bf16 %v2204, %v2201
    %v2286 = vpack.c.bf16 %v2205, %v2202
    %v2287 = vpack.c.bf16 %v2209, %v2206
    %v2288 = vpack.c.bf16 %v2210, %v2207
    %v2289 = vpack.c.bf16 %v2211, %v2208
    %v2290 = vpack.c.bf16 %v2215, %v2212
    %v2291 = vpack.c.bf16 %v2216, %v2213
    %v2292 = vpack.c.bf16 %v2217, %v2214
    %v2293 = vpack.c.bf16 %v2221, %v2218
    %v2294 = vpack.c.bf16 %v2222, %v2219
    %v2295 = vpack.c.bf16 %v2223, %v2220
    %v2296 = vpack.c.bf16 %v2227, %v2224
    %v2297 = vpack.c.bf16 %v2228, %v2225
    %v2298 = vpack.c.bf16 %v2229, %v2226
    %v2299 = vpack.c.bf16 %v2233, %v2230
    %v2300 = vpack.c.bf16 %v2234, %v2231
    %v2301 = vpack.c.bf16 %v2235, %v2232
    %v2302 = vpack.c.bf16 %v2239, %v2236
    %v2303 = vpack.c.bf16 %v2240, %v2237
    %v2304 = vpack.c.bf16 %v2241, %v2238
    %v2305 = vpack.c.bf16 %v2245, %v2242
    %v2306 = vpack.c.bf16 %v2246, %v2243
    %v2307 = vpack.c.bf16 %v2247, %v2244
    %v2308 = vpack.c.bf16 %v2251, %v2248
    %v2309 = vpack.c.bf16 %v2252, %v2249
    %v2310 = vpack.c.bf16 %v2253, %v2250
    %v2311 = vpack.c.bf16 %v2257, %v2254
    %v2312 = vpack.c.bf16 %v2258, %v2255
    %v2313 = vpack.c.bf16 %v2259, %v2256
    %v2314 = vpack.c.bf16 %v2263, %v2260
    %v2315 = vpack.c.bf16 %v2264, %v2261
    %v2316 = vpack.c.bf16 %v2265, %v2262
    %v2317 = vpack.c.bf16 %v2269, %v2266
    %v2318 = vpack.c.bf16 %v2270, %v2267
    %v2319 = vpack.c.bf16 %v2271, %v2268
    %v2320 = vld [vmem:[%s5] sm:$0xf]
    %v2321 = vld [vmem:[%s5 + $0x4] sm:$0xf]
    %v2322 = vld [vmem:[%s5 + $0x8] sm:$0xf]
    %v2323 = vld [vmem:[%s5 + $0xc] sm:$0xf]
    %v2324 = vld [vmem:[%s5 + $0x10] sm:$0xf]
    %v2325 = vld [vmem:[%s5 + $0x14] sm:$0xf]
    %v2326 = vld [vmem:[%s5 + $0x18] sm:$0xf]
    %v2327 = vld [vmem:[%s5 + $0x1c] sm:$0xf]
    %v2328 = vld [vmem:[%s5 + $0x20] sm:$0xf]
    %v2329 = vld [vmem:[%s5 + $0x24] sm:$0xf]
    %v2330 = vld [vmem:[%s5 + $0x28] sm:$0xf]
    %v2331 = vld [vmem:[%s5 + $0x2c] sm:$0xf]
    %v2332 = vld [vmem:[%s5 + $0x30] sm:$0xf]
    %v2333 = vld [vmem:[%s5 + $0x34] sm:$0xf]
    %v2334 = vld [vmem:[%s5 + $0x38] sm:$0xf]
    %v2335 = vld [vmem:[%s5 + $0x3c] sm:$0xf]
    %v2336 = vld [vmem:[%s5 + $0x40] sm:$0xf]
    %v2337 = vld [vmem:[%s5 + $0x44] sm:$0xf]
    %v2338 = vld [vmem:[%s5 + $0x48] sm:$0xf]
    %v2339 = vld [vmem:[%s5 + $0x4c] sm:$0xf]
    %v2340 = vld [vmem:[%s5 + $0x50] sm:$0xf]
    %v2341 = vld [vmem:[%s5 + $0x54] sm:$0xf]
    %v2342 = vld [vmem:[%s5 + $0x58] sm:$0xf]
    %v2343 = vld [vmem:[%s5 + $0x5c] sm:$0xf]
    %v2344 = vld [vmem:[%s5 + $0x60] sm:$0xf]
    %v2345 = vld [vmem:[%s5 + $0x64] sm:$0xf]
    %v2346 = vld [vmem:[%s5 + $0x68] sm:$0xf]
    %v2347 = vld [vmem:[%s5 + $0x6c] sm:$0xf]
    %v2348 = vld [vmem:[%s5 + $0x70] sm:$0xf]
    %v2349 = vld [vmem:[%s5 + $0x74] sm:$0xf]
    %v2350 = vld [vmem:[%s5 + $0x78] sm:$0xf]
    %v2351 = vld [vmem:[%s5 + $0x7c] sm:$0xf]
    %v2352 = vld [vmem:[%s5 + $0x80] sm:$0xf]
    %v2353 = vld [vmem:[%s5 + $0x84] sm:$0xf]
    %v2354 = vld [vmem:[%s5 + $0x88] sm:$0xf]
    %v2355 = vld [vmem:[%s5 + $0x8c] sm:$0xf]
    %v2356 = vld [vmem:[%s5 + $0x90] sm:$0xf]
    %v2357 = vld [vmem:[%s5 + $0x94] sm:$0xf]
    %v2358 = vld [vmem:[%s5 + $0x98] sm:$0xf]
    %v2359 = vld [vmem:[%s5 + $0x9c] sm:$0xf]
    %v2360 = vld [vmem:[%s5 + $0xa0] sm:$0xf]
    %v2361 = vld [vmem:[%s5 + $0xa4] sm:$0xf]
    %v2362 = vld [vmem:[%s5 + $0xa8] sm:$0xf]
    %v2363 = vld [vmem:[%s5 + $0xac] sm:$0xf]
    %v2364 = vld [vmem:[%s5 + $0xb0] sm:$0xf]
    %v2365 = vld [vmem:[%s5 + $0xb4] sm:$0xf]
    %v2366 = vld [vmem:[%s5 + $0xb8] sm:$0xf]
    %v2367 = vld [vmem:[%s5 + $0xbc] sm:$0xf]
    %v2368 = vld [vmem:[%s6] sm:$0x1]
    %v2370 = vlaneseq
    %v2371 = vshrl.u32 %v2370, 7
    %v2372 = vsub.s32 0, %v2371
    %v2373 = vrot.slane %v2368, %v2372
    %v2423 = vunpack.c.l.b16 %v2320
    %v2424 = vunpack.c.l.b16 %v2321
    %v2425 = vunpack.c.l.b16 %v2322
    %v2426 = vunpack.c.l.b16 %v2323
    %v2427 = vunpack.c.l.b16 %v2324
    %v2428 = vunpack.c.l.b16 %v2325
    %v2429 = vunpack.c.l.b16 %v2326
    %v2430 = vunpack.c.l.b16 %v2327
    %v2431 = vunpack.c.l.b16 %v2328
    %v2432 = vunpack.c.l.b16 %v2329
    %v2433 = vunpack.c.l.b16 %v2330
    %v2434 = vunpack.c.l.b16 %v2331
    %v2435 = vunpack.c.l.b16 %v2332
    %v2436 = vunpack.c.l.b16 %v2333
    %v2437 = vunpack.c.l.b16 %v2334
    %v2438 = vunpack.c.l.b16 %v2335
    %v2439 = vunpack.c.l.b16 %v2336
    %v2440 = vunpack.c.l.b16 %v2337
    %v2441 = vunpack.c.l.b16 %v2338
    %v2442 = vunpack.c.l.b16 %v2339
    %v2443 = vunpack.c.l.b16 %v2340
    %v2444 = vunpack.c.l.b16 %v2341
    %v2445 = vunpack.c.l.b16 %v2342
    %v2446 = vunpack.c.l.b16 %v2343
    %v2447 = vunpack.c.l.b16 %v2344
    %v2448 = vunpack.c.l.b16 %v2345
    %v2449 = vunpack.c.l.b16 %v2346
    %v2450 = vunpack.c.l.b16 %v2347
    %v2451 = vunpack.c.l.b16 %v2348
    %v2452 = vunpack.c.l.b16 %v2349
    %v2453 = vunpack.c.l.b16 %v2350
    %v2454 = vunpack.c.l.b16 %v2351
    %v2455 = vunpack.c.l.b16 %v2352
    %v2456 = vunpack.c.l.b16 %v2353
    %v2457 = vunpack.c.l.b16 %v2354
    %v2458 = vunpack.c.l.b16 %v2355
    %v2459 = vunpack.c.l.b16 %v2356
    %v2460 = vunpack.c.l.b16 %v2357
    %v2461 = vunpack.c.l.b16 %v2358
    %v2462 = vunpack.c.l.b16 %v2359
    %v2463 = vunpack.c.l.b16 %v2360
    %v2464 = vunpack.c.l.b16 %v2361
    %v2465 = vunpack.c.l.b16 %v2362
    %v2466 = vunpack.c.l.b16 %v2363
    %v2467 = vunpack.c.l.b16 %v2364
    %v2468 = vunpack.c.l.b16 %v2365
    %v2469 = vunpack.c.l.b16 %v2366
    %v2470 = vunpack.c.l.b16 %v2367
    %v2471 = vpack.c.b16 %v2424, %v2423
    %v2472 = vpack.c.b16 %v2426, %v2425
    %v2473 = vpack.c.b16 %v2428, %v2427
    %v2474 = vpack.c.b16 %v2430, %v2429
    %v2475 = vpack.c.b16 %v2432, %v2431
    %v2476 = vpack.c.b16 %v2434, %v2433
    %v2477 = vpack.c.b16 %v2436, %v2435
    %v2478 = vpack.c.b16 %v2438, %v2437
    %v2479 = vpack.c.b16 %v2440, %v2439
    %v2480 = vpack.c.b16 %v2442, %v2441
    %v2481 = vpack.c.b16 %v2444, %v2443
    %v2482 = vpack.c.b16 %v2446, %v2445
    %v2483 = vpack.c.b16 %v2448, %v2447
    %v2484 = vpack.c.b16 %v2450, %v2449
    %v2485 = vpack.c.b16 %v2452, %v2451
    %v2486 = vpack.c.b16 %v2454, %v2453
    %v2487 = vpack.c.b16 %v2456, %v2455
    %v2488 = vpack.c.b16 %v2458, %v2457
    %v2489 = vpack.c.b16 %v2460, %v2459
    %v2490 = vpack.c.b16 %v2462, %v2461
    %v2491 = vpack.c.b16 %v2464, %v2463
    %v2492 = vpack.c.b16 %v2466, %v2465
    %v2493 = vpack.c.b16 %v2468, %v2467
    %v2494 = vpack.c.b16 %v2470, %v2469
    %2519 = vmatprep.subr.bf16.mxu0 0
    %2520 = vmatpush1.bf16.msra.mxu0 %v2478
    %2521 = vmatprep.subr.bf16.mxu0 0
    %2522 = vmatpush1.bf16.msra.mxu0 %v2477
    %2523 = vmatprep.subr.bf16.mxu0 0
    %2524 = vmatpush1.bf16.msra.mxu0 %v2476
    %2525 = vmatprep.subr.bf16.mxu0 0
    %2526 = vmatpush1.bf16.msra.mxu0 %v2475
    %2527 = vmatprep.subr.bf16.mxu0 0
    %2528 = vmatpush1.bf16.msra.mxu0 %v2474
    %2529 = vmatprep.subr.bf16.mxu0 0
    %2530 = vmatpush1.bf16.msra.mxu0 %v2473
    %2531 = vmatprep.subr.bf16.mxu0 0
    %2532 = vmatpush1.bf16.msra.mxu0 %v2472
    %2533 = vmatprep.subr.bf16.mxu0 0
    %2534 = vmatpush1.bf16.msra.mxu0 %v2471
    %2535 = vmatprep.subr.bf16.mxu0 0
    %2536 = vmatpush2.bf16.msra.mxu0 %v2486
    %2537 = vmatprep.subr.bf16.mxu0 0
    %2538 = vmatpush2.bf16.msra.mxu0 %v2485
    %2539 = vmatprep.subr.bf16.mxu0 0
    %2540 = vmatpush2.bf16.msra.mxu0 %v2484
    %2541 = vmatprep.subr.bf16.mxu0 0
    %2542 = vmatpush2.bf16.msra.mxu0 %v2483
    %2543 = vmatprep.subr.bf16.mxu0 0
    %2544 = vmatpush2.bf16.msra.mxu0 %v2482
    %2545 = vmatprep.subr.bf16.mxu0 0
    %2546 = vmatpush2.bf16.msra.mxu0 %v2481
    %2547 = vmatprep.subr.bf16.mxu0 0
    %2548 = vmatpush2.bf16.msra.mxu0 %v2480
    %2549 = vmatprep.subr.bf16.mxu0 0
    %2550 = vmatpush2.bf16.msra.mxu0 %v2479
    %2551 = vmatprep.mubr.bf16.mxu0 %v2273
    %2552 = vmatmul.mubr.bf16.gmra.mxu0 %v2272
    %v2553 = vpop.f32.mrf.mxu0
    %v2554 = vadd.f32 %v2373, %v2553
    %v2555 = vpop.f32.mrf.mxu0
    %v2556 = vpop.f32.mrf.mxu0
    %v2557 = vadd.f32 %v2373, %v2556
    %v2558 = vpop.f32.mrf.mxu0
    %2559 = vmatprep.mubr.bf16.mxu0 %v2276
    %2560 = vmatmul.mubr.bf16.gmra.mxu0 %v2275
    %v2561 = vpop.f32.mrf.mxu0
    %v2562 = vadd.f32 %v2373, %v2561
    %v2563 = vpop.f32.mrf.mxu0
    %v2564 = vpop.f32.mrf.mxu0
    %v2565 = vadd.f32 %v2373, %v2564
    %v2566 = vpop.f32.mrf.mxu0
    %2567 = vmatprep.mubr.bf16.mxu0 %v2279
    %2568 = vmatmul.mubr.bf16.gmra.mxu0 %v2278
    %v2569 = vpop.f32.mrf.mxu0
    %v2570 = vadd.f32 %v2373, %v2569
    %v2571 = vpop.f32.mrf.mxu0
    %v2572 = vpop.f32.mrf.mxu0
    %v2573 = vadd.f32 %v2373, %v2572
    %v2574 = vpop.f32.mrf.mxu0
    %2575 = vmatprep.mubr.bf16.mxu0 %v2282
    %2576 = vmatmul.mubr.bf16.gmra.mxu0 %v2281
    %v2577 = vpop.f32.mrf.mxu0
    %v2578 = vadd.f32 %v2373, %v2577
    %v2579 = vpop.f32.mrf.mxu0
    %v2580 = vpop.f32.mrf.mxu0
    %v2581 = vadd.f32 %v2373, %v2580
    %v2582 = vpop.f32.mrf.mxu0
    %2583 = vmatprep.mubr.bf16.mxu0 %v2285
    %2584 = vmatmul.mubr.bf16.gmra.mxu0 %v2284
    %v2585 = vpop.f32.mrf.mxu0
    %v2586 = vadd.f32 %v2373, %v2585
    %v2587 = vpop.f32.mrf.mxu0
    %v2588 = vpop.f32.mrf.mxu0
    %v2589 = vadd.f32 %v2373, %v2588
    %v2590 = vpop.f32.mrf.mxu0
    %2591 = vmatprep.mubr.bf16.mxu0 %v2288
    %2592 = vmatmul.mubr.bf16.gmra.mxu0 %v2287
    %v2593 = vpop.f32.mrf.mxu0
    %v2594 = vadd.f32 %v2373, %v2593
    %v2595 = vpop.f32.mrf.mxu0
    %v2596 = vpop.f32.mrf.mxu0
    %v2597 = vadd.f32 %v2373, %v2596
    %v2598 = vpop.f32.mrf.mxu0
    %2599 = vmatprep.mubr.bf16.mxu0 %v2291
    %2600 = vmatmul.mubr.bf16.gmra.mxu0 %v2290
    %v2601 = vpop.f32.mrf.mxu0
    %v2602 = vadd.f32 %v2373, %v2601
    %v2603 = vpop.f32.mrf.mxu0
    %v2604 = vpop.f32.mrf.mxu0
    %v2605 = vadd.f32 %v2373, %v2604
    %v2606 = vpop.f32.mrf.mxu0
    %2607 = vmatprep.mubr.bf16.mxu0 %v2294
    %2608 = vmatmul.mubr.bf16.gmra.mxu0 %v2293
    %v2609 = vpop.f32.mrf.mxu0
    %v2610 = vadd.f32 %v2373, %v2609
    %v2611 = vpop.f32.mrf.mxu0
    %v2612 = vpop.f32.mrf.mxu0
    %v2613 = vadd.f32 %v2373, %v2612
    %v2614 = vpop.f32.mrf.mxu0
    %2615 = vmatprep.mubr.bf16.mxu0 %v2297
    %2616 = vmatmul.mubr.bf16.gmra.mxu0 %v2296
    %v2617 = vpop.f32.mrf.mxu0
    %v2618 = vadd.f32 %v2373, %v2617
    %v2619 = vpop.f32.mrf.mxu0
    %v2620 = vpop.f32.mrf.mxu0
    %v2621 = vadd.f32 %v2373, %v2620
    %v2622 = vpop.f32.mrf.mxu0
    %2623 = vmatprep.mubr.bf16.mxu0 %v2300
    %2624 = vmatmul.mubr.bf16.gmra.mxu0 %v2299
    %v2625 = vpop.f32.mrf.mxu0
    %v2626 = vadd.f32 %v2373, %v2625
    %v2627 = vpop.f32.mrf.mxu0
    %v2628 = vpop.f32.mrf.mxu0
    %v2629 = vadd.f32 %v2373, %v2628
    %v2630 = vpop.f32.mrf.mxu0
    %2631 = vmatprep.mubr.bf16.mxu0 %v2303
    %2632 = vmatmul.mubr.bf16.gmra.mxu0 %v2302
    %v2633 = vpop.f32.mrf.mxu0
    %v2634 = vadd.f32 %v2373, %v2633
    %v2635 = vpop.f32.mrf.mxu0
    %v2636 = vpop.f32.mrf.mxu0
    %v2637 = vadd.f32 %v2373, %v2636
    %v2638 = vpop.f32.mrf.mxu0
    %2639 = vmatprep.mubr.bf16.mxu0 %v2306
    %2640 = vmatmul.mubr.bf16.gmra.mxu0 %v2305
    %v2641 = vpop.f32.mrf.mxu0
    %v2642 = vadd.f32 %v2373, %v2641
    %v2643 = vpop.f32.mrf.mxu0
    %v2644 = vpop.f32.mrf.mxu0
    %v2645 = vadd.f32 %v2373, %v2644
    %v2646 = vpop.f32.mrf.mxu0
    %2647 = vmatprep.mubr.bf16.mxu0 %v2309
    %2648 = vmatmul.mubr.bf16.gmra.mxu0 %v2308
    %v2649 = vpop.f32.mrf.mxu0
    %v2650 = vadd.f32 %v2373, %v2649
    %v2651 = vpop.f32.mrf.mxu0
    %v2652 = vpop.f32.mrf.mxu0
    %v2653 = vadd.f32 %v2373, %v2652
    %v2654 = vpop.f32.mrf.mxu0
    %2655 = vmatprep.mubr.bf16.mxu0 %v2312
    %2656 = vmatmul.mubr.bf16.gmra.mxu0 %v2311
    %v2657 = vpop.f32.mrf.mxu0
    %v2658 = vadd.f32 %v2373, %v2657
    %v2659 = vpop.f32.mrf.mxu0
    %v2660 = vpop.f32.mrf.mxu0
    %v2661 = vadd.f32 %v2373, %v2660
    %v2662 = vpop.f32.mrf.mxu0
    %2663 = vmatprep.mubr.bf16.mxu0 %v2315
    %2664 = vmatmul.mubr.bf16.gmra.mxu0 %v2314
    %v2665 = vpop.f32.mrf.mxu0
    %v2666 = vadd.f32 %v2373, %v2665
    %v2667 = vpop.f32.mrf.mxu0
    %v2668 = vpop.f32.mrf.mxu0
    %v2669 = vadd.f32 %v2373, %v2668
    %v2670 = vpop.f32.mrf.mxu0
    %2671 = vmatprep.mubr.bf16.mxu0 %v2318
    %2672 = vmatmul.mubr.bf16.gmra.mxu0 %v2317
    %v2673 = vpop.f32.mrf.mxu0
    %v2674 = vadd.f32 %v2373, %v2673
    %v2675 = vpop.f32.mrf.mxu0
    %v2676 = vpop.f32.mrf.mxu0
    %v2677 = vadd.f32 %v2373, %v2676
    %v2678 = vpop.f32.mrf.mxu0
    %2679 = vdwg.mxu0
    %2680 = vmatprep.subr.bf16.mxu0 0
    %2681 = vmatpush1.bf16.msra.mxu0 %v2494
    %2682 = vmatprep.subr.bf16.mxu0 0
    %2683 = vmatpush1.bf16.msra.mxu0 %v2493
    %2684 = vmatprep.subr.bf16.mxu0 0
    %2685 = vmatpush1.bf16.msra.mxu0 %v2492
    %2686 = vmatprep.subr.bf16.mxu0 0
    %2687 = vmatpush1.bf16.msra.mxu0 %v2491
    %2688 = vmatprep.subr.bf16.mxu0 0
    %2689 = vmatpush1.bf16.msra.mxu0 %v2490
    %2690 = vmatprep.subr.bf16.mxu0 0
    %2691 = vmatpush1.bf16.msra.mxu0 %v2489
    %2692 = vmatprep.subr.bf16.mxu0 0
    %2693 = vmatpush1.bf16.msra.mxu0 %v2488
    %2694 = vmatprep.subr.bf16.mxu0 0
    %2695 = vmatpush1.bf16.msra.mxu0 %v2487
    %2696 = vmatprep.subr.bf16.mxu0 0
    %2697 = vmatpush2.bf16.msra.mxu0 0
    %2698 = vmatprep.subr.bf16.mxu0 0
    %2699 = vmatpush2.bf16.msra.mxu0 0
    %2700 = vmatprep.subr.bf16.mxu0 0
    %2701 = vmatpush2.bf16.msra.mxu0 0
    %2702 = vmatprep.subr.bf16.mxu0 0
    %2703 = vmatpush2.bf16.msra.mxu0 0
    %2704 = vmatprep.subr.bf16.mxu0 0
    %2705 = vmatpush2.bf16.msra.mxu0 0
    %2706 = vmatprep.subr.bf16.mxu0 0
    %2707 = vmatpush2.bf16.msra.mxu0 0
    %2708 = vmatprep.subr.bf16.mxu0 0
    %2709 = vmatpush2.bf16.msra.mxu0 0
    %2710 = vmatprep.subr.bf16.mxu0 0
    %2711 = vmatpush2.bf16.msra.mxu0 0
    %2712 = vmatprep.mubr.bf16.mxu0 0
    %2713 = vmatmul.mubr.bf16.gmra.mxu0 %v2274
    %v2714 = vpop.f32.mrf.mxu0
    %v2715 = vadd.f32 %v2554, %v2714
    %v2716 = vpop.f32.mrf.mxu0
    %v2717 = vpop.f32.mrf.mxu0
    %v2718 = vadd.f32 %v2557, %v2717
    %v2719 = vpop.f32.mrf.mxu0
    %2720 = vmatprep.mubr.bf16.mxu0 0
    %2721 = vmatmul.mubr.bf16.gmra.mxu0 %v2277
    %v2722 = vpop.f32.mrf.mxu0
    %v2723 = vadd.f32 %v2562, %v2722
    %v2724 = vpop.f32.mrf.mxu0
    %v2725 = vpop.f32.mrf.mxu0
    %v2726 = vadd.f32 %v2565, %v2725
    %v2727 = vpop.f32.mrf.mxu0
    %2728 = vmatprep.mubr.bf16.mxu0 0
    %2729 = vmatmul.mubr.bf16.gmra.mxu0 %v2280
    %v2730 = vpop.f32.mrf.mxu0
    %v2731 = vadd.f32 %v2570, %v2730
    %v2732 = vpop.f32.mrf.mxu0
    %v2733 = vpop.f32.mrf.mxu0
    %v2734 = vadd.f32 %v2573, %v2733
    %v2735 = vpop.f32.mrf.mxu0
    %2736 = vmatprep.mubr.bf16.mxu0 0
    %2737 = vmatmul.mubr.bf16.gmra.mxu0 %v2283
    %v2738 = vpop.f32.mrf.mxu0
    %v2739 = vadd.f32 %v2578, %v2738
    %v2740 = vpop.f32.mrf.mxu0
    %v2741 = vpop.f32.mrf.mxu0
    %v2742 = vadd.f32 %v2581, %v2741
    %v2743 = vpop.f32.mrf.mxu0
    %2744 = vmatprep.mubr.bf16.mxu0 0
    %2745 = vmatmul.mubr.bf16.gmra.mxu0 %v2286
    %v2746 = vpop.f32.mrf.mxu0
    %v2747 = vadd.f32 %v2586, %v2746
    %v2748 = vpop.f32.mrf.mxu0
    %v2749 = vpop.f32.mrf.mxu0
    %v2750 = vadd.f32 %v2589, %v2749
    %v2751 = vpop.f32.mrf.mxu0
    %2752 = vmatprep.mubr.bf16.mxu0 0
    %2753 = vmatmul.mubr.bf16.gmra.mxu0 %v2289
    %v2754 = vpop.f32.mrf.mxu0
    %v2755 = vadd.f32 %v2594, %v2754
    %v2756 = vpop.f32.mrf.mxu0
    %v2757 = vpop.f32.mrf.mxu0
    %v2758 = vadd.f32 %v2597, %v2757
    %v2759 = vpop.f32.mrf.mxu0
    %2760 = vmatprep.mubr.bf16.mxu0 0
    %2761 = vmatmul.mubr.bf16.gmra.mxu0 %v2292
    %v2762 = vpop.f32.mrf.mxu0
    %v2763 = vadd.f32 %v2602, %v2762
    %v2764 = vpop.f32.mrf.mxu0
    %v2765 = vpop.f32.mrf.mxu0
    %v2766 = vadd.f32 %v2605, %v2765
    %v2767 = vpop.f32.mrf.mxu0
    %2768 = vmatprep.mubr.bf16.mxu0 0
    %2769 = vmatmul.mubr.bf16.gmra.mxu0 %v2295
    %v2770 = vpop.f32.mrf.mxu0
    %v2771 = vadd.f32 %v2610, %v2770
    %v2772 = vpop.f32.mrf.mxu0
    %v2773 = vpop.f32.mrf.mxu0
    %v2774 = vadd.f32 %v2613, %v2773
    %v2775 = vpop.f32.mrf.mxu0
    %2776 = vmatprep.mubr.bf16.mxu0 0
    %2777 = vmatmul.mubr.bf16.gmra.mxu0 %v2298
    %v2778 = vpop.f32.mrf.mxu0
    %v2779 = vadd.f32 %v2618, %v2778
    %v2780 = vpop.f32.mrf.mxu0
    %v2781 = vpop.f32.mrf.mxu0
    %v2782 = vadd.f32 %v2621, %v2781
    %v2783 = vpop.f32.mrf.mxu0
    %2784 = vmatprep.mubr.bf16.mxu0 0
    %2785 = vmatmul.mubr.bf16.gmra.mxu0 %v2301
    %v2786 = vpop.f32.mrf.mxu0
    %v2787 = vadd.f32 %v2626, %v2786
    %v2788 = vpop.f32.mrf.mxu0
    %v2789 = vpop.f32.mrf.mxu0
    %v2790 = vadd.f32 %v2629, %v2789
    %v2791 = vpop.f32.mrf.mxu0
    %2792 = vmatprep.mubr.bf16.mxu0 0
    %2793 = vmatmul.mubr.bf16.gmra.mxu0 %v2304
    %v2794 = vpop.f32.mrf.mxu0
    %v2795 = vadd.f32 %v2634, %v2794
    %v2796 = vpop.f32.mrf.mxu0
    %v2797 = vpop.f32.mrf.mxu0
    %v2798 = vadd.f32 %v2637, %v2797
    %v2799 = vpop.f32.mrf.mxu0
    %2800 = vmatprep.mubr.bf16.mxu0 0
    %2801 = vmatmul.mubr.bf16.gmra.mxu0 %v2307
    %v2802 = vpop.f32.mrf.mxu0
    %v2803 = vadd.f32 %v2642, %v2802
    %v2804 = vpop.f32.mrf.mxu0
    %v2805 = vpop.f32.mrf.mxu0
    %v2806 = vadd.f32 %v2645, %v2805
    %v2807 = vpop.f32.mrf.mxu0
    %2808 = vmatprep.mubr.bf16.mxu0 0
    %2809 = vmatmul.mubr.bf16.gmra.mxu0 %v2310
    %v2810 = vpop.f32.mrf.mxu0
    %v2811 = vadd.f32 %v2650, %v2810
    %v2812 = vpop.f32.mrf.mxu0
    %v2813 = vpop.f32.mrf.mxu0
    %v2814 = vadd.f32 %v2653, %v2813
    %v2815 = vpop.f32.mrf.mxu0
    %2816 = vmatprep.mubr.bf16.mxu0 0
    %2817 = vmatmul.mubr.bf16.gmra.mxu0 %v2313
    %v2818 = vpop.f32.mrf.mxu0
    %v2819 = vadd.f32 %v2658, %v2818
    %v2820 = vpop.f32.mrf.mxu0
    %v2821 = vpop.f32.mrf.mxu0
    %v2822 = vadd.f32 %v2661, %v2821
    %v2823 = vpop.f32.mrf.mxu0
    %2824 = vmatprep.mubr.bf16.mxu0 0
    %2825 = vmatmul.mubr.bf16.gmra.mxu0 %v2316
    %v2826 = vpop.f32.mrf.mxu0
    %v2827 = vadd.f32 %v2666, %v2826
    %v2828 = vpop.f32.mrf.mxu0
    %v2829 = vpop.f32.mrf.mxu0
    %v2830 = vadd.f32 %v2669, %v2829
    %v2831 = vpop.f32.mrf.mxu0
    %2832 = vmatprep.mubr.bf16.mxu0 0
    %2833 = vmatmul.mubr.bf16.gmra.mxu0 %v2319
    %v2834 = vpop.f32.mrf.mxu0
    %v2835 = vadd.f32 %v2674, %v2834
    %v2836 = vpop.f32.mrf.mxu0
    %v2837 = vpop.f32.mrf.mxu0
    %v2838 = vadd.f32 %v2677, %v2837
    %v2839 = vpop.f32.mrf.mxu0
    %2840 = vdwg.mxu0
    %v2841 = vtanh.pop %v2715
    %v2842 = vtanh.pop %v2718
    %v2843 = vtanh.pop %v2723
    %v2844 = vtanh.pop %v2726
    %v2845 = vtanh.pop %v2731
    %v2846 = vtanh.pop %v2734
    %v2847 = vtanh.pop %v2739
    %v2848 = vtanh.pop %v2742
    %v2849 = vtanh.pop %v2747
    %v2850 = vtanh.pop %v2750
    %v2851 = vtanh.pop %v2755
    %v2852 = vtanh.pop %v2758
    %v2853 = vtanh.pop %v2763
    %v2854 = vtanh.pop %v2766
    %v2855 = vtanh.pop %v2771
    %v2856 = vtanh.pop %v2774
    %v2857 = vtanh.pop %v2779
    %v2858 = vtanh.pop %v2782
    %v2859 = vtanh.pop %v2787
    %v2860 = vtanh.pop %v2790
    %v2861 = vtanh.pop %v2795
    %v2862 = vtanh.pop %v2798
    %v2863 = vtanh.pop %v2803
    %v2864 = vtanh.pop %v2806
    %v2865 = vtanh.pop %v2811
    %v2866 = vtanh.pop %v2814
    %v2867 = vtanh.pop %v2819
    %v2868 = vtanh.pop %v2822
    %v2869 = vtanh.pop %v2827
    %v2870 = vtanh.pop %v2830
    %v2871 = vtanh.pop %v2835
    %v2872 = vtanh.pop %v2838
    %v2873 = vmul.f32 %v2841, 0.05
    %v2874 = vmul.f32 %v2842, 0.05
    %v2875 = vmul.f32 %v2843, 0.05
    %v2876 = vmul.f32 %v2844, 0.05
    %v2877 = vmul.f32 %v2845, 0.05
    %v2878 = vmul.f32 %v2846, 0.05
    %v2879 = vmul.f32 %v2847, 0.05
    %v2880 = vmul.f32 %v2848, 0.05
    %v2881 = vmul.f32 %v2849, 0.05
    %v2882 = vmul.f32 %v2850, 0.05
    %v2883 = vmul.f32 %v2851, 0.05
    %v2884 = vmul.f32 %v2852, 0.05
    %v2885 = vmul.f32 %v2853, 0.05
    %v2886 = vmul.f32 %v2854, 0.05
    %v2887 = vmul.f32 %v2855, 0.05
    %v2888 = vmul.f32 %v2856, 0.05
    %v2889 = vmul.f32 %v2857, 0.05
    %v2890 = vmul.f32 %v2858, 0.05
    %v2891 = vmul.f32 %v2859, 0.05
    %v2892 = vmul.f32 %v2860, 0.05
    %v2893 = vmul.f32 %v2861, 0.05
    %v2894 = vmul.f32 %v2862, 0.05
    %v2895 = vmul.f32 %v2863, 0.05
    %v2896 = vmul.f32 %v2864, 0.05
    %v2897 = vmul.f32 %v2865, 0.05
    %v2898 = vmul.f32 %v2866, 0.05
    %v2899 = vmul.f32 %v2867, 0.05
    %v2900 = vmul.f32 %v2868, 0.05
    %v2901 = vmul.f32 %v2869, 0.05
    %v2902 = vmul.f32 %v2870, 0.05
    %v2903 = vmul.f32 %v2871, 0.05
    %v2904 = vmul.f32 %v2872, 0.05
    %v2905 = vadd.f32 %v2873, %v41
    %v2906 = vadd.f32 %v2874, %v42
    %v2907 = vadd.f32 %v2875, %v43
    %v2908 = vadd.f32 %v2876, %v44
    %v2909 = vadd.f32 %v2877, %v45
    %v2910 = vadd.f32 %v2878, %v46
    %v2911 = vadd.f32 %v2879, %v47
    %v2912 = vadd.f32 %v2880, %v48
    %v2913 = vadd.f32 %v2881, %v49
    %v2914 = vadd.f32 %v2882, %v50
    %v2915 = vadd.f32 %v2883, %v51
    %v2916 = vadd.f32 %v2884, %v52
    %v2917 = vadd.f32 %v2885, %v53
    %v2918 = vadd.f32 %v2886, %v54
    %v2919 = vadd.f32 %v2887, %v55
    %v2920 = vadd.f32 %v2888, %v56
    %v2921 = vadd.f32 %v2889, %v57
    %v2922 = vadd.f32 %v2890, %v58
    %v2923 = vadd.f32 %v2891, %v59
    %v2924 = vadd.f32 %v2892, %v60
    %v2925 = vadd.f32 %v2893, %v61
    %v2926 = vadd.f32 %v2894, %v62
    %v2927 = vadd.f32 %v2895, %v63
    %v2928 = vadd.f32 %v2896, %v64
    %v2929 = vadd.f32 %v2897, %v65
    %v2930 = vadd.f32 %v2898, %v66
    %v2931 = vadd.f32 %v2899, %v67
    %v2932 = vadd.f32 %v2900, %v68
    %v2933 = vadd.f32 %v2901, %v69
    %v2934 = vadd.f32 %v2902, %v70
    %v2935 = vadd.f32 %v2903, %v71
    %v2936 = vadd.f32 %v2904, %v72
    %v2937 = vmax.f32 %v2905, -1.0
    %v2938 = vmax.f32 %v2906, -1.0
    %v2939 = vmax.f32 %v2907, -1.0
    %v2940 = vmax.f32 %v2908, -1.0
    %v2941 = vmax.f32 %v2909, -1.0
    %v2942 = vmax.f32 %v2910, -1.0
    %v2943 = vmax.f32 %v2911, -1.0
    %v2944 = vmax.f32 %v2912, -1.0
    %v2945 = vmax.f32 %v2913, -1.0
    %v2946 = vmax.f32 %v2914, -1.0
    %v2947 = vmax.f32 %v2915, -1.0
    %v2948 = vmax.f32 %v2916, -1.0
    %v2949 = vmax.f32 %v2917, -1.0
    %v2950 = vmax.f32 %v2918, -1.0
    %v2951 = vmax.f32 %v2919, -1.0
    %v2952 = vmax.f32 %v2920, -1.0
    %v2953 = vmax.f32 %v2921, -1.0
    %v2954 = vmax.f32 %v2922, -1.0
    %v2955 = vmax.f32 %v2923, -1.0
    %v2956 = vmax.f32 %v2924, -1.0
    %v2957 = vmax.f32 %v2925, -1.0
    %v2958 = vmax.f32 %v2926, -1.0
    %v2959 = vmax.f32 %v2927, -1.0
    %v2960 = vmax.f32 %v2928, -1.0
    %v2961 = vmax.f32 %v2929, -1.0
    %v2962 = vmax.f32 %v2930, -1.0
    %v2963 = vmax.f32 %v2931, -1.0
    %v2964 = vmax.f32 %v2932, -1.0
    %v2965 = vmax.f32 %v2933, -1.0
    %v2966 = vmax.f32 %v2934, -1.0
    %v2967 = vmax.f32 %v2935, -1.0
    %v2968 = vmax.f32 %v2936, -1.0
    %v2969 = vmin.f32 %v2937, 1.0
    %v2970 = vmin.f32 %v2938, 1.0
    %v2971 = vmin.f32 %v2939, 1.0
    %v2972 = vmin.f32 %v2940, 1.0
    %v2973 = vmin.f32 %v2941, 1.0
    %v2974 = vmin.f32 %v2942, 1.0
    %v2975 = vmin.f32 %v2943, 1.0
    %v2976 = vmin.f32 %v2944, 1.0
    %v2977 = vmin.f32 %v2945, 1.0
    %v2978 = vmin.f32 %v2946, 1.0
    %v2979 = vmin.f32 %v2947, 1.0
    %v2980 = vmin.f32 %v2948, 1.0
    %v2981 = vmin.f32 %v2949, 1.0
    %v2982 = vmin.f32 %v2950, 1.0
    %v2983 = vmin.f32 %v2951, 1.0
    %v2984 = vmin.f32 %v2952, 1.0
    %v2985 = vmin.f32 %v2953, 1.0
    %v2986 = vmin.f32 %v2954, 1.0
    %v2987 = vmin.f32 %v2955, 1.0
    %v2988 = vmin.f32 %v2956, 1.0
    %v2989 = vmin.f32 %v2957, 1.0
    %v2990 = vmin.f32 %v2958, 1.0
    %v2991 = vmin.f32 %v2959, 1.0
    %v2992 = vmin.f32 %v2960, 1.0
    %v2993 = vmin.f32 %v2961, 1.0
    %v2994 = vmin.f32 %v2962, 1.0
    %v2995 = vmin.f32 %v2963, 1.0
    %v2996 = vmin.f32 %v2964, 1.0
    %v2997 = vmin.f32 %v2965, 1.0
    %v2998 = vmin.f32 %v2966, 1.0
    %v2999 = vmin.f32 %v2967, 1.0
    %v3000 = vmin.f32 %v2968, 1.0
    %vm3001 = vcmask 64512
    %3002 = vst.msk [vmem:[%s7] sm:$0xff] %vm3001, %v2969
    %3003 = vst.msk [vmem:[%s7 + $0x8] sm:$0xff] %vm3001, %v2970
    %3004 = vst.msk [vmem:[%s7 + $0x10] sm:$0xff] %vm3001, %v2971
    %3005 = vst.msk [vmem:[%s7 + $0x18] sm:$0xff] %vm3001, %v2972
    %3006 = vst.msk [vmem:[%s7 + $0x20] sm:$0xff] %vm3001, %v2973
    %3007 = vst.msk [vmem:[%s7 + $0x28] sm:$0xff] %vm3001, %v2974
    %3008 = vst.msk [vmem:[%s7 + $0x30] sm:$0xff] %vm3001, %v2975
    %3009 = vst.msk [vmem:[%s7 + $0x38] sm:$0xff] %vm3001, %v2976
    %3010 = vst.msk [vmem:[%s7 + $0x40] sm:$0xff] %vm3001, %v2977
    %3011 = vst.msk [vmem:[%s7 + $0x48] sm:$0xff] %vm3001, %v2978
    %3012 = vst.msk [vmem:[%s7 + $0x50] sm:$0xff] %vm3001, %v2979
    %3013 = vst.msk [vmem:[%s7 + $0x58] sm:$0xff] %vm3001, %v2980
    %3014 = vst.msk [vmem:[%s7 + $0x60] sm:$0xff] %vm3001, %v2981
    %3015 = vst.msk [vmem:[%s7 + $0x68] sm:$0xff] %vm3001, %v2982
    %3016 = vst.msk [vmem:[%s7 + $0x70] sm:$0xff] %vm3001, %v2983
    %3017 = vst.msk [vmem:[%s7 + $0x78] sm:$0xff] %vm3001, %v2984
    %3018 = vst.msk [vmem:[%s7 + $0x80] sm:$0xff] %vm3001, %v2985
    %3019 = vst.msk [vmem:[%s7 + $0x88] sm:$0xff] %vm3001, %v2986
    %3020 = vst.msk [vmem:[%s7 + $0x90] sm:$0xff] %vm3001, %v2987
    %3021 = vst.msk [vmem:[%s7 + $0x98] sm:$0xff] %vm3001, %v2988
    %3022 = vst.msk [vmem:[%s7 + $0xa0] sm:$0xff] %vm3001, %v2989
    %3023 = vst.msk [vmem:[%s7 + $0xa8] sm:$0xff] %vm3001, %v2990
    %3024 = vst.msk [vmem:[%s7 + $0xb0] sm:$0xff] %vm3001, %v2991
    %3025 = vst.msk [vmem:[%s7 + $0xb8] sm:$0xff] %vm3001, %v2992
    %3026 = vst.msk [vmem:[%s7 + $0xc0] sm:$0xff] %vm3001, %v2993
    %3027 = vst.msk [vmem:[%s7 + $0xc8] sm:$0xff] %vm3001, %v2994
    %3028 = vst.msk [vmem:[%s7 + $0xd0] sm:$0xff] %vm3001, %v2995
    %3029 = vst.msk [vmem:[%s7 + $0xd8] sm:$0xff] %vm3001, %v2996
    %3030 = vst.msk [vmem:[%s7 + $0xe0] sm:$0xff] %vm3001, %v2997
    %3031 = vst.msk [vmem:[%s7 + $0xe8] sm:$0xff] %vm3001, %v2998
    %3032 = vst.msk [vmem:[%s7 + $0xf0] sm:$0xff] %vm3001, %v2999
    %3033 = vst.msk [vmem:[%s7 + $0xf8] sm:$0xff] %vm3001, %v3000
    // Predicated region
    $region34: #{actor_forward.1} parent=1 // pred_check
      _
    $region35: #{actor_forward.1} parent=1 // pred_check_branch
      %3035 = sbr.rel (0) target = $region37
    $region36: #{actor_forward.1} parent=1 // pred_region
      _
    $region37: #{actor_forward.1} parent=1 // pred_fallthru
      _
    // Predicated region
    $region38: #{actor_forward.1} parent=1 // pred_check
      _
    $region39: #{actor_forward.1} parent=1 // pred_check_branch
      %3037 = sbr.rel (0) target = $region41
    $region40: #{actor_forward.1} parent=1 // pred_region
      _
    $region41: #{actor_forward.1} parent=1 // pred_fallthru
      _
    %3038 = vsyncpa [#allocation3], 1

</llo_original>
